<compile_context>
chip_gen: v6e
topology: v6e:2x2x1
jax: 0.10.0
libtpu: 0.0.40
codegen_flags: <defaults>
</compile_context>

<pallas_src>
import functools

import jax
import jax.numpy as jnp
from jax.experimental import pallas as pl
from jax.experimental.pallas import tpu as pltpu


# -----------------------------------------------------------------------------
# Fused Pallas kernel: proj1 -> 10 x (X_Attention + LN + ReLU) -> (oup o proj2)
# -----------------------------------------------------------------------------
def _denosier_kernel(
    x_ref, t_ref, c_ref,
    cos_ref, sin_ref, rot_ref, qmask_ref, hsum_ref,
    p1xw_ref, p1tw_ref, p1b_ref,
    qw_ref, qb_ref, vw_ref, vb_ref, ow_ref, ob_ref, g_ref, bb_ref,
    fw_ref, fb_ref,
    o_ref, *, num_heads, num_layers, scale, eps,
):
    f32 = jnp.float32

    x = x_ref[0]              # (s, 128)
    t = t_ref[0]              # (s, 10)
    c = c_ref[0]              # (s, inp)   condition (constant across layers)

    cos_f = cos_ref[...]      # (s, hidden) cos table tiled across heads
    sin_f = sin_ref[...]      # (s, hidden)
    rot = rot_ref[...]        # (hidden, hidden) block-diag signed permutation
    qmask = qmask_ref[...]    # (H*s, hidden) per-head lane mask
    hsum = hsum_ref[...]      # (s, H*s) head-sum / row-gather matrix

    # proj1 split as x @ Wx + t @ Wt + b (avoids the 138-wide concat).
    h0 = (jnp.dot(x, p1xw_ref[...], preferred_element_type=f32)
          + jnp.dot(t, p1tw_ref[...], preferred_element_type=f32)
          + p1b_ref[...])

    def layer(l, h):
        # Projections: Q from condition c, V from current activation h.
        q = jnp.dot(c, qw_ref[l], preferred_element_type=f32) + qb_ref[l]
        v = jnp.dot(h, vw_ref[l], preferred_element_type=f32) + vb_ref[l]

        # Full-width rotary on Q: q*cos + (q @ R)*sin  (R = per-head half-rot).
        q = q * cos_f + jnp.dot(q, rot, preferred_element_type=f32) * sin_f

        # Per-head attention without lane slicing: replicate q rows once per
        # head (sublane axis) and mask each replica to its head's lanes.
        qe = jnp.concatenate([q] * num_heads, axis=0) * qmask        # (H*s, hidden)
        s_ = jnp.dot(qe, v.T, preferred_element_type=f32) * scale    # (H*s, s)
        s_ = s_ - jnp.max(s_, axis=-1, keepdims=True)
        p = jnp.exp(s_)
        p = p / jnp.sum(p, axis=-1, keepdims=True)                   # exact (tolerance)
        o_full = jnp.dot(p, v, preferred_element_type=f32)           # (H*s, hidden)
        attn = jnp.dot(hsum, o_full * qmask,
                       preferred_element_type=f32)                   # (s, hidden)

        # Output projection + residual.
        h = jnp.dot(attn, ow_ref[l], preferred_element_type=f32) + ob_ref[l] + h

        # LayerNorm (biased variance, eps=1e-5) + ReLU.
        mu = jnp.mean(h, axis=-1, keepdims=True)
        var = jnp.mean((h - mu) * (h - mu), axis=-1, keepdims=True)
        h = (h - mu) * jax.lax.rsqrt(var + eps) * g_ref[l] + bb_ref[l]
        return jnp.maximum(h, 0.0)

    h = jax.lax.fori_loop(0, num_layers, layer, h0)

    # oup and proj2 collapsed into a single linear.
    out = jnp.dot(h, fw_ref[...], preferred_element_type=f32) + fb_ref[...]
    o_ref[0] = out.astype(o_ref.dtype)


# -----------------------------------------------------------------------------
# Wrapper: packs weights / constant tables and launches the single pallas_call
# -----------------------------------------------------------------------------
def rope_tables(seq, dh, base=10000.0):
    theta = 1.0 / (base ** (jnp.arange(0, dh, 2, dtype=jnp.float32) / dh))
    idx = jnp.arange(seq, dtype=jnp.float32)
    idx_theta = jnp.einsum("n,d->nd", idx, theta)
    idx_theta2 = jnp.concatenate([idx_theta, idx_theta], axis=1)     # (seq, dh)
    return jnp.cos(idx_theta2), jnp.sin(idx_theta2)


def denosier_forward(params, x, c, t, *, num_heads):
    B, S, XF = x.shape
    TF = t.shape[-1]
    inp = params["proj1_w"].shape[1]
    layers = params["block1"] + params["block2"]
    L = len(layers)
    hidden = layers[0]["qw"].shape[1]
    assert hidden % num_heads == 0
    dh = hidden // num_heads
    assert dh % 2 == 0
    half = dh // 2
    scale = float(dh) ** (-0.5)

    # --- constant tables (constant-folded under jit) ---
    cos, sin = rope_tables(S, dh)
    cos_f = jnp.tile(cos, (1, num_heads))                            # (S, hidden)
    sin_f = jnp.tile(sin, (1, num_heads))                            # (S, hidden)
    blk = jnp.zeros((dh, dh), jnp.float32)
    blk = blk.at[:half, half:].set(jnp.eye(half, dtype=jnp.float32))
    blk = blk.at[half:, :half].set(-jnp.eye(half, dtype=jnp.float32))
    rot = jnp.kron(jnp.eye(num_heads, dtype=jnp.float32), blk)       # (hidden, hidden)
    head_mask = jnp.repeat(jnp.eye(num_heads, dtype=jnp.float32), dh, axis=1)
    qmask = jnp.repeat(head_mask, S, axis=0)                         # (H*S, hidden)
    hsum = jnp.tile(jnp.eye(S, dtype=jnp.float32), (1, num_heads))   # (S, H*S)

    # --- proj1 split at the x/t feature boundary ---
    p1xw = params["proj1_w"][:XF]
    p1tw = params["proj1_w"][XF:]
    p1b = params["proj1_b"]

    # --- stacked per-layer attention weights (VMEM-resident, fetched once) ---
    qw = jnp.stack([p["qw"] for p in layers])      # (L, inp, hidden)
    qb = jnp.stack([p["qb"] for p in layers])      # (L, 1, hidden)
    vw = jnp.stack([p["vw"] for p in layers])
    vb = jnp.stack([p["vb"] for p in layers])
    ow = jnp.stack([p["ow"] for p in layers])      # (L, hidden, inp)
    ob = jnp.stack([p["ob"] for p in layers])
    g = jnp.stack([p["gamma"] for p in layers])    # (L, 1, inp)
    bb = jnp.stack([p["beta"] for p in layers])

    # --- oup o proj2 collapsed (no nonlinearity in between) ---
    fw = params["oup_w"] @ params["proj2_w"]                         # (inp, 10)
    fb = params["oup_b"] @ params["proj2_w"] + params["proj2_b"]     # (1, 10)
    OUT = fw.shape[1]
    HS = num_heads * S

    kernel = functools.partial(
        _denosier_kernel, num_heads=num_heads, num_layers=L, scale=scale, eps=1e-5
    )
    return pl.pallas_call(
        kernel,
        out_shape=jax.ShapeDtypeStruct((B, S, OUT), jnp.float32),
        grid=(B,),
        in_specs=[
            pl.BlockSpec((1, S, XF), lambda i: (i, 0, 0)),           # x
            pl.BlockSpec((1, S, TF), lambda i: (i, 0, 0)),           # t
            pl.BlockSpec((1, S, inp), lambda i: (i, 0, 0)),          # c
            pl.BlockSpec((S, hidden), lambda i: (0, 0)),             # cos (tiled)
            pl.BlockSpec((S, hidden), lambda i: (0, 0)),             # sin (tiled)
            pl.BlockSpec((hidden, hidden), lambda i: (0, 0)),        # rotary R
            pl.BlockSpec((HS, hidden), lambda i: (0, 0)),            # head lane mask
            pl.BlockSpec((S, HS), lambda i: (0, 0)),                 # head-sum matrix
            pl.BlockSpec((XF, inp), lambda i: (0, 0)),               # proj1 Wx
            pl.BlockSpec((TF, inp), lambda i: (0, 0)),               # proj1 Wt
            pl.BlockSpec((1, inp), lambda i: (0, 0)),                # proj1 b
            pl.BlockSpec((L, inp, hidden), lambda i: (0, 0, 0)),     # Qw
            pl.BlockSpec((L, 1, hidden), lambda i: (0, 0, 0)),       # Qb
            pl.BlockSpec((L, inp, hidden), lambda i: (0, 0, 0)),     # Vw
            pl.BlockSpec((L, 1, hidden), lambda i: (0, 0, 0)),       # Vb
            pl.BlockSpec((L, hidden, inp), lambda i: (0, 0, 0)),     # Ow
            pl.BlockSpec((L, 1, inp), lambda i: (0, 0, 0)),          # Ob
            pl.BlockSpec((L, 1, inp), lambda i: (0, 0, 0)),          # LN gamma
            pl.BlockSpec((L, 1, inp), lambda i: (0, 0, 0)),          # LN beta
            pl.BlockSpec((inp, OUT), lambda i: (0, 0)),              # fused final W
            pl.BlockSpec((1, OUT), lambda i: (0, 0)),                # fused final b
        ],
        out_specs=pl.BlockSpec((1, S, OUT), lambda i: (i, 0, 0)),
        compiler_params=pltpu.CompilerParams(dimension_semantics=("parallel",)),
    )(x, t, c, cos_f, sin_f, rot, qmask, hsum,
      p1xw, p1tw, p1b, qw, qb, vw, vb, ow, ob, g, bb, fw, fb)


# -----------------------------------------------------------------------------
# Parameter initialization (deterministic, synthetic)
# -----------------------------------------------------------------------------
def init_params(key, *, inp, oup, hidden, num_heads, in_feat=138, out_feat=10):
    def lin(k, fan_in, fan_out, scale=0.1):
        kw, kb = jax.random.split(k)
        return (scale * jax.random.normal(kw, (fan_in, fan_out), jnp.float32),
                scale * jax.random.normal(kb, (1, fan_out), jnp.float32))

    keys = jax.random.split(key, 16)
    params = {}
    params["proj1_w"], params["proj1_b"] = lin(keys[0], in_feat, inp)
    params["oup_w"], params["oup_b"] = lin(keys[1], inp, oup)
    params["proj2_w"], params["proj2_b"] = lin(keys[2], oup, out_feat)

    def attn_block(k):
        blk = []
        ks = jax.random.split(k, 5)
        for kk in ks:
            k1, k2, k3, k4, k5 = jax.random.split(kk, 5)
            qw, qb = lin(k1, inp, hidden)
            vw, vb = lin(k2, inp, hidden)
            ow, ob = lin(k3, hidden, inp)
            gamma = 1.0 + 0.05 * jax.random.normal(k4, (1, inp), jnp.float32)
            beta = 0.05 * jax.random.normal(k5, (1, inp), jnp.float32)
            # TODO(synk): the PyTorch module also owns a K linear layer, but its
            # output never feeds the forward computation, so it is omitted here.
            blk.append(dict(qw=qw, qb=qb, vw=vw, vb=vb, ow=ow, ob=ob,
                            gamma=gamma, beta=beta))
        return blk

    params["block1"] = attn_block(keys[3])
    params["block2"] = attn_block(keys[4])
    return params


# -----------------------------------------------------------------------------
# Pure-JAX reference (mirrors the PyTorch code) for a correctness check
# -----------------------------------------------------------------------------
def _rope_ref(x4, cos, sin):
    d = x4.shape[-1]
    d2 = d // 2
    neg_half = jnp.concatenate([-x4[..., d2:], x4[..., :d2]], axis=-1)
    return x4 * cos[None, :, None, :] + neg_half * sin[None, :, None, :]


def _xattn_ref(x, c, p, cos, sin, num_heads):
    b, s, inp = x.shape
    hidden = p["qw"].shape[1]
    dh = hidden // num_heads
    scale = float(dh) ** (-0.5)
    q = (c @ p["qw"] + p["qb"]).reshape(b, s, num_heads, dh)
    v = (x @ p["vw"] + p["vb"]).reshape(b, s, num_heads, dh)
    q = _rope_ref(q, cos, sin)
    att = jnp.einsum("bihd,bjhd->bhij", q, v) * scale
    att = jax.nn.softmax(att, axis=-1)
    h = jnp.einsum("bhij,bjhd->bihd", att, v).reshape(b, s, hidden)
    h = h @ p["ow"] + p["ob"]
    return h + x


def _ln_ref(x, g, b, eps=1e-5):
    m = x.mean(-1, keepdims=True)
    v = ((x - m) ** 2).mean(-1, keepdims=True)
    return (x - m) / jnp.sqrt(v + eps) * g + b


def denosier_ref(params, x, c, t, *, num_heads):
    b, s, _ = x.shape
    hidden = params["block1"][0]["qw"].shape[1]
    dh = hidden // num_heads
    cos, sin = rope_tables(s, dh)
    h = jnp.concatenate([x, t], axis=-1) @ params["proj1_w"] + params["proj1_b"]
    for blk_name in ("block1", "block2"):
        for p in params[blk_name]:
            h = _xattn_ref(h, c, p, cos, sin, num_heads)
            h = _ln_ref(h, p["gamma"], p["beta"])
            h = jnp.maximum(h, 0.0)
    h = h @ params["oup_w"] + params["oup_b"]
    return h @ params["proj2_w"] + params["proj2_b"]


# -----------------------------------------------------------------------------
if __name__ == "__main__":
    INP, OUP, HIDDEN, NUM_HEADS = 32, 16, 32, 4
    B, S = 2, 8
    X_FEAT, T_FEAT = 128, 10          # 128 + 10 = 138 -> proj1 input

    key = jax.random.PRNGKey(0)
    kx, kc, kt, kp = jax.random.split(key, 4)
    x = jax.random.normal(kx, (B, S, X_FEAT), jnp.float32)
    c = jax.random.normal(kc, (B, S, INP), jnp.float32)
    t = jax.random.normal(kt, (B, S, T_FEAT), jnp.float32)
    params = init_params(kp, inp=INP, oup=OUP, hidden=HIDDEN, num_heads=NUM_HEADS)

    fwd = jax.jit(functools.partial(denosier_forward, num_heads=NUM_HEADS))
    out = fwd(params, x, c, t)
    jax.block_until_ready(out)

    ref = denosier_ref(params, x, c, t, num_heads=NUM_HEADS)
    assert out.shape == (B, S, 10), out.shape
    assert jnp.allclose(out, ref, atol=2e-3, rtol=2e-3), (
        float(jnp.max(jnp.abs(out - ref))))

    print("KERNEL_OK")
</pallas_src>

<mosaic_0001>
module attributes {stable_mosaic.version = 11 : i64} {
  func.func @_denosier_kernel(%arg0: i32, %arg1: memref<1x8x128xf32, #tpu.memory_space<vmem>>, %arg2: memref<1x8x10xf32, #tpu.memory_space<vmem>>, %arg3: memref<1x8x32xf32, #tpu.memory_space<vmem>>, %arg4: memref<8x32xf32, #tpu.memory_space<vmem>>, %arg5: memref<8x32xf32, #tpu.memory_space<vmem>>, %arg6: memref<32x32xf32, #tpu.memory_space<vmem>>, %arg7: memref<32x32xf32, #tpu.memory_space<vmem>>, %arg8: memref<8x32xf32, #tpu.memory_space<vmem>>, %arg9: memref<128x32xf32, #tpu.memory_space<vmem>>, %arg10: memref<10x32xf32, #tpu.memory_space<vmem>>, %arg11: memref<1x32xf32, #tpu.memory_space<vmem>>, %arg12: memref<10x32x32xf32, #tpu.memory_space<vmem>>, %arg13: memref<10x1x32xf32, #tpu.memory_space<vmem>>, %arg14: memref<10x32x32xf32, #tpu.memory_space<vmem>>, %arg15: memref<10x1x32xf32, #tpu.memory_space<vmem>>, %arg16: memref<10x32x32xf32, #tpu.memory_space<vmem>>, %arg17: memref<10x1x32xf32, #tpu.memory_space<vmem>>, %arg18: memref<10x1x32xf32, #tpu.memory_space<vmem>>, %arg19: memref<10x1x32xf32, #tpu.memory_space<vmem>>, %arg20: memref<32x10xf32, #tpu.memory_space<vmem>>, %arg21: memref<1x10xf32, #tpu.memory_space<vmem>>, %arg22: memref<1x8x10xf32, #tpu.memory_space<vmem>>) attributes {dimension_semantics = [#tpu.dimension_semantics<parallel>], iteration_bounds = array<i64: 2>, scalar_prefetch = 0 : i64, scratch_operands = 0 : i64, tpu.core_type = #tpu.core_type<tc>, window_params = [{transform_indices = @transform_0, window_bounds = array<i64: 1, 8, 128>}, {transform_indices = @transform_1, window_bounds = array<i64: 1, 8, 10>}, {transform_indices = @transform_2, window_bounds = array<i64: 1, 8, 32>}, {pipeline_mode = #tpu.pipeline_mode<synchronous>, transform_indices = @transform_3, window_bounds = array<i64: 8, 32>}, {pipeline_mode = #tpu.pipeline_mode<synchronous>, transform_indices = @transform_4, window_bounds = array<i64: 8, 32>}, {pipeline_mode = #tpu.pipeline_mode<synchronous>, transform_indices = @transform_5, window_bounds = array<i64: 32, 32>}, {pipeline_mode = #tpu.pipeline_mode<synchronous>, transform_indices = @transform_6, window_bounds = array<i64: 32, 32>}, {pipeline_mode = #tpu.pipeline_mode<synchronous>, transform_indices = @transform_7, window_bounds = array<i64: 8, 32>}, {pipeline_mode = #tpu.pipeline_mode<synchronous>, transform_indices = @transform_8, window_bounds = array<i64: 128, 32>}, {pipeline_mode = #tpu.pipeline_mode<synchronous>, transform_indices = @transform_9, window_bounds = array<i64: 10, 32>}, {pipeline_mode = #tpu.pipeline_mode<synchronous>, transform_indices = @transform_10, window_bounds = array<i64: 1, 32>}, {pipeline_mode = #tpu.pipeline_mode<synchronous>, transform_indices = @transform_11, window_bounds = array<i64: 10, 32, 32>}, {pipeline_mode = #tpu.pipeline_mode<synchronous>, transform_indices = @transform_12, window_bounds = array<i64: 10, 1, 32>}, {pipeline_mode = #tpu.pipeline_mode<synchronous>, transform_indices = @transform_13, window_bounds = array<i64: 10, 32, 32>}, {pipeline_mode = #tpu.pipeline_mode<synchronous>, transform_indices = @transform_14, window_bounds = array<i64: 10, 1, 32>}, {pipeline_mode = #tpu.pipeline_mode<synchronous>, transform_indices = @transform_15, window_bounds = array<i64: 10, 32, 32>}, {pipeline_mode = #tpu.pipeline_mode<synchronous>, transform_indices = @transform_16, window_bounds = array<i64: 10, 1, 32>}, {pipeline_mode = #tpu.pipeline_mode<synchronous>, transform_indices = @transform_17, window_bounds = array<i64: 10, 1, 32>}, {pipeline_mode = #tpu.pipeline_mode<synchronous>, transform_indices = @transform_18, window_bounds = array<i64: 10, 1, 32>}, {pipeline_mode = #tpu.pipeline_mode<synchronous>, transform_indices = @transform_19, window_bounds = array<i64: 32, 10>}, {pipeline_mode = #tpu.pipeline_mode<synchronous>, transform_indices = @transform_20, window_bounds = array<i64: 1, 10>}, {transform_indices = @transform_21, window_bounds = array<i64: 1, 8, 10>}]} {
    %c0 = arith.constant 0 : index
    %c0_0 = arith.constant 0 : index
    %c0_1 = arith.constant 0 : index
    %0 = vector.load %arg1[%c0, %c0_0, %c0_1] : memref<1x8x128xf32, #tpu.memory_space<vmem>>, vector<1x8x128xf32>
    %1 = vector.shape_cast %0 : vector<1x8x128xf32> to vector<8x128xf32>
    %c0_2 = arith.constant 0 : index
    %c0_3 = arith.constant 0 : index
    %c0_4 = arith.constant 0 : index
    %2 = vector.load %arg2[%c0_2, %c0_3, %c0_4] : memref<1x8x10xf32, #tpu.memory_space<vmem>>, vector<1x8x10xf32>
    %3 = vector.shape_cast %2 : vector<1x8x10xf32> to vector<8x10xf32>
    %c0_5 = arith.constant 0 : index
    %c0_6 = arith.constant 0 : index
    %c0_7 = arith.constant 0 : index
    %4 = vector.load %arg3[%c0_5, %c0_6, %c0_7] : memref<1x8x32xf32, #tpu.memory_space<vmem>>, vector<1x8x32xf32>
    %5 = vector.shape_cast %4 : vector<1x8x32xf32> to vector<8x32xf32>
    %c0_8 = arith.constant 0 : index
    %c0_9 = arith.constant 0 : index
    %6 = vector.load %arg4[%c0_8, %c0_9] : memref<8x32xf32, #tpu.memory_space<vmem>>, vector<8x32xf32>
    %c0_10 = arith.constant 0 : index
    %c0_11 = arith.constant 0 : index
    %7 = vector.load %arg5[%c0_10, %c0_11] : memref<8x32xf32, #tpu.memory_space<vmem>>, vector<8x32xf32>
    %c0_12 = arith.constant 0 : index
    %c0_13 = arith.constant 0 : index
    %8 = vector.load %arg6[%c0_12, %c0_13] : memref<32x32xf32, #tpu.memory_space<vmem>>, vector<32x32xf32>
    %c0_14 = arith.constant 0 : index
    %c0_15 = arith.constant 0 : index
    %9 = vector.load %arg7[%c0_14, %c0_15] : memref<32x32xf32, #tpu.memory_space<vmem>>, vector<32x32xf32>
    %c0_16 = arith.constant 0 : index
    %c0_17 = arith.constant 0 : index
    %10 = vector.load %arg8[%c0_16, %c0_17] : memref<8x32xf32, #tpu.memory_space<vmem>>, vector<8x32xf32>
    %c0_18 = arith.constant 0 : index
    %c0_19 = arith.constant 0 : index
    %11 = vector.load %arg9[%c0_18, %c0_19] : memref<128x32xf32, #tpu.memory_space<vmem>>, vector<128x32xf32>
    %cst = arith.constant dense<0.000000e+00> : vector<8x32xf32>
    %12 = tpu.matmul %1, %11, %cst {dimension_numbers = #tpu.dot_dimension_numbers<[1], [0], [0], [1], [0, 0, 1, 1], [], []>} : vector<8x128xf32>, vector<128x32xf32>, vector<8x32xf32> -> vector<8x32xf32>
    %c0_20 = arith.constant 0 : index
    %c0_21 = arith.constant 0 : index
    %13 = vector.load %arg10[%c0_20, %c0_21] : memref<10x32xf32, #tpu.memory_space<vmem>>, vector<10x32xf32>
    %cst_22 = arith.constant dense<0.000000e+00> : vector<8x32xf32>
    %14 = tpu.matmul %3, %13, %cst_22 {dimension_numbers = #tpu.dot_dimension_numbers<[1], [0], [0], [1], [0, 0, 1, 1], [], []>} : vector<8x10xf32>, vector<10x32xf32>, vector<8x32xf32> -> vector<8x32xf32>
    %15 = arith.addf %12, %14 : vector<8x32xf32>
    %c0_23 = arith.constant 0 : index
    %c0_24 = arith.constant 0 : index
    %16 = vector.load %arg11[%c0_23, %c0_24] : memref<1x32xf32, #tpu.memory_space<vmem>>, vector<1x32xf32>
    %17 = vector.broadcast %16 : vector<1x32xf32> to vector<8x32xf32>
    %18 = arith.addf %15, %17 : vector<8x32xf32>
    %c0_i32 = arith.constant 0 : i32
    %c10_i32 = arith.constant 10 : i32
    %19 = arith.addi %c0_i32, %c10_i32 : i32
    %c1_i32 = arith.constant 1 : i32
    %20 = scf.for %arg23 = %c0_i32 to %19 step %c1_i32 iter_args(%arg24 = %18) -> (vector<8x32xf32>)  : i32 {
      %29 = arith.index_cast %arg23 : i32 to index
      %c0_34 = arith.constant 0 : index
      %c0_35 = arith.constant 0 : index
      %30 = vector.load %arg12[%29, %c0_34, %c0_35] : memref<10x32x32xf32, #tpu.memory_space<vmem>>, vector<1x32x32xf32>
      %31 = vector.shape_cast %30 : vector<1x32x32xf32> to vector<32x32xf32>
      %cst_36 = arith.constant dense<0.000000e+00> : vector<8x32xf32>
      %32 = tpu.matmul %5, %31, %cst_36 {dimension_numbers = #tpu.dot_dimension_numbers<[1], [0], [0], [1], [0, 0, 1, 1], [], []>} : vector<8x32xf32>, vector<32x32xf32>, vector<8x32xf32> -> vector<8x32xf32>
      %33 = arith.index_cast %arg23 : i32 to index
      %c0_37 = arith.constant 0 : index
      %c0_38 = arith.constant 0 : index
      %34 = vector.load %arg13[%33, %c0_37, %c0_38] : memref<10x1x32xf32, #tpu.memory_space<vmem>>, vector<1x1x32xf32>
      %35 = vector.shape_cast %34 : vector<1x1x32xf32> to vector<1x32xf32>
      %36 = vector.broadcast %35 : vector<1x32xf32> to vector<8x32xf32>
      %37 = arith.addf %32, %36 : vector<8x32xf32>
      %38 = arith.index_cast %arg23 : i32 to index
      %c0_39 = arith.constant 0 : index
      %c0_40 = arith.constant 0 : index
      %39 = vector.load %arg14[%38, %c0_39, %c0_40] : memref<10x32x32xf32, #tpu.memory_space<vmem>>, vector<1x32x32xf32>
      %40 = vector.shape_cast %39 : vector<1x32x32xf32> to vector<32x32xf32>
      %cst_41 = arith.constant dense<0.000000e+00> : vector<8x32xf32>
      %41 = tpu.matmul %arg24, %40, %cst_41 {dimension_numbers = #tpu.dot_dimension_numbers<[1], [0], [0], [1], [0, 0, 1, 1], [], []>} : vector<8x32xf32>, vector<32x32xf32>, vector<8x32xf32> -> vector<8x32xf32>
      %42 = arith.index_cast %arg23 : i32 to index
      %c0_42 = arith.constant 0 : index
      %c0_43 = arith.constant 0 : index
      %43 = vector.load %arg15[%42, %c0_42, %c0_43] : memref<10x1x32xf32, #tpu.memory_space<vmem>>, vector<1x1x32xf32>
      %44 = vector.shape_cast %43 : vector<1x1x32xf32> to vector<1x32xf32>
      %45 = vector.broadcast %44 : vector<1x32xf32> to vector<8x32xf32>
      %46 = arith.addf %41, %45 : vector<8x32xf32>
      %47 = arith.mulf %37, %6 : vector<8x32xf32>
      %cst_44 = arith.constant dense<0.000000e+00> : vector<8x32xf32>
      %48 = tpu.matmul %37, %8, %cst_44 {dimension_numbers = #tpu.dot_dimension_numbers<[1], [0], [0], [1], [0, 0, 1, 1], [], []>} : vector<8x32xf32>, vector<32x32xf32>, vector<8x32xf32> -> vector<8x32xf32>
      %49 = arith.mulf %48, %7 : vector<8x32xf32>
      %50 = arith.addf %47, %49 : vector<8x32xf32>
      %51 = tpu.concatenate %50, %50, %50, %50 in 0 : vector<8x32xf32>, vector<8x32xf32>, vector<8x32xf32>, vector<8x32xf32> -> vector<32x32xf32>
      %52 = arith.mulf %51, %9 : vector<32x32xf32>
      %53 = tpu.transpose %46, [1, 0] : vector<8x32xf32> -> vector<32x8xf32>
      %cst_45 = arith.constant dense<0.000000e+00> : vector<32x8xf32>
      %54 = tpu.matmul %52, %53, %cst_45 {dimension_numbers = #tpu.dot_dimension_numbers<[1], [0], [0], [1], [0, 0, 1, 1], [], []>} : vector<32x32xf32>, vector<32x8xf32>, vector<32x8xf32> -> vector<32x8xf32>
      %cst_46 = arith.constant 0.353553385 : f32
      %55 = vector.broadcast %cst_46 : f32 to vector<32x8xf32>
      %56 = arith.mulf %54, %55 : vector<32x8xf32>
      %cst_47 = arith.constant dense<0xFF800000> : vector<32xf32>
      %57 = vector.multi_reduction <maximumf>, %56, %cst_47 [1] : vector<32x8xf32> to vector<32xf32>
      %58 = vector.shape_cast %57 : vector<32xf32> to vector<32x1xf32>
      %59 = vector.broadcast %58 : vector<32x1xf32> to vector<32x8xf32>
      %60 = arith.subf %56, %59 : vector<32x8xf32>
      %61 = math.exp %60 : vector<32x8xf32>
      %cst_48 = arith.constant dense<0.000000e+00> : vector<32xf32>
      %62 = vector.multi_reduction <add>, %61, %cst_48 [1] : vector<32x8xf32> to vector<32xf32>
      %63 = vector.shape_cast %62 : vector<32xf32> to vector<32x1xf32>
      %64 = vector.broadcast %63 : vector<32x1xf32> to vector<32x8xf32>
      %65 = arith.divf %61, %64 : vector<32x8xf32>
      %cst_49 = arith.constant dense<0.000000e+00> : vector<32x32xf32>
      %66 = tpu.matmul %65, %46, %cst_49 {dimension_numbers = #tpu.dot_dimension_numbers<[1], [0], [0], [1], [0, 0, 1, 1], [], []>} : vector<32x8xf32>, vector<8x32xf32>, vector<32x32xf32> -> vector<32x32xf32>
      %67 = arith.mulf %66, %9 : vector<32x32xf32>
      %cst_50 = arith.constant dense<0.000000e+00> : vector<8x32xf32>
      %68 = tpu.matmul %10, %67, %cst_50 {dimension_numbers = #tpu.dot_dimension_numbers<[1], [0], [0], [1], [0, 0, 1, 1], [], []>} : vector<8x32xf32>, vector<32x32xf32>, vector<8x32xf32> -> vector<8x32xf32>
      %69 = arith.index_cast %arg23 : i32 to index
      %c0_51 = arith.constant 0 : index
      %c0_52 = arith.constant 0 : index
      %70 = vector.load %arg16[%69, %c0_51, %c0_52] : memref<10x32x32xf32, #tpu.memory_space<vmem>>, vector<1x32x32xf32>
      %71 = vector.shape_cast %70 : vector<1x32x32xf32> to vector<32x32xf32>
      %cst_53 = arith.constant dense<0.000000e+00> : vector<8x32xf32>
      %72 = tpu.matmul %68, %71, %cst_53 {dimension_numbers = #tpu.dot_dimension_numbers<[1], [0], [0], [1], [0, 0, 1, 1], [], []>} : vector<8x32xf32>, vector<32x32xf32>, vector<8x32xf32> -> vector<8x32xf32>
      %73 = arith.index_cast %arg23 : i32 to index
      %c0_54 = arith.constant 0 : index
      %c0_55 = arith.constant 0 : index
      %74 = vector.load %arg17[%73, %c0_54, %c0_55] : memref<10x1x32xf32, #tpu.memory_space<vmem>>, vector<1x1x32xf32>
      %75 = vector.shape_cast %74 : vector<1x1x32xf32> to vector<1x32xf32>
      %76 = vector.broadcast %75 : vector<1x32xf32> to vector<8x32xf32>
      %77 = arith.addf %72, %76 : vector<8x32xf32>
      %78 = arith.addf %77, %arg24 : vector<8x32xf32>
      %cst_56 = arith.constant dense<0.000000e+00> : vector<8xf32>
      %79 = vector.multi_reduction <add>, %78, %cst_56 [1] : vector<8x32xf32> to vector<8xf32>
      %80 = vector.shape_cast %79 : vector<8xf32> to vector<8x1xf32>
      %cst_57 = arith.constant 3.200000e+01 : f32
      %81 = vector.broadcast %cst_57 : f32 to vector<8x1xf32>
      %82 = arith.divf %80, %81 : vector<8x1xf32>
      %83 = vector.broadcast %82 : vector<8x1xf32> to vector<8x32xf32>
      %84 = arith.subf %78, %83 : vector<8x32xf32>
      %85 = vector.broadcast %82 : vector<8x1xf32> to vector<8x32xf32>
      %86 = arith.subf %78, %85 : vector<8x32xf32>
      %87 = arith.mulf %84, %86 : vector<8x32xf32>
      %cst_58 = arith.constant dense<0.000000e+00> : vector<8xf32>
      %88 = vector.multi_reduction <add>, %87, %cst_58 [1] : vector<8x32xf32> to vector<8xf32>
      %89 = vector.shape_cast %88 : vector<8xf32> to vector<8x1xf32>
      %cst_59 = arith.constant 3.200000e+01 : f32
      %90 = vector.broadcast %cst_59 : f32 to vector<8x1xf32>
      %91 = arith.divf %89, %90 : vector<8x1xf32>
      %92 = vector.broadcast %82 : vector<8x1xf32> to vector<8x32xf32>
      %93 = arith.subf %78, %92 : vector<8x32xf32>
      %cst_60 = arith.constant 9.99999974E-6 : f32
      %94 = vector.broadcast %cst_60 : f32 to vector<8x1xf32>
      %95 = arith.addf %91, %94 : vector<8x1xf32>
      %96 = math.rsqrt %95 : vector<8x1xf32>
      %97 = vector.broadcast %96 : vector<8x1xf32> to vector<8x32xf32>
      %98 = arith.mulf %93, %97 : vector<8x32xf32>
      %99 = arith.index_cast %arg23 : i32 to index
      %c0_61 = arith.constant 0 : index
      %c0_62 = arith.constant 0 : index
      %100 = vector.load %arg18[%99, %c0_61, %c0_62] : memref<10x1x32xf32, #tpu.memory_space<vmem>>, vector<1x1x32xf32>
      %101 = vector.shape_cast %100 : vector<1x1x32xf32> to vector<1x32xf32>
      %102 = vector.broadcast %101 : vector<1x32xf32> to vector<8x32xf32>
      %103 = arith.mulf %98, %102 : vector<8x32xf32>
      %104 = arith.index_cast %arg23 : i32 to index
      %c0_63 = arith.constant 0 : index
      %c0_64 = arith.constant 0 : index
      %105 = vector.load %arg19[%104, %c0_63, %c0_64] : memref<10x1x32xf32, #tpu.memory_space<vmem>>, vector<1x1x32xf32>
      %106 = vector.shape_cast %105 : vector<1x1x32xf32> to vector<1x32xf32>
      %107 = vector.broadcast %106 : vector<1x32xf32> to vector<8x32xf32>
      %108 = arith.addf %103, %107 : vector<8x32xf32>
      %cst_65 = arith.constant 0.000000e+00 : f32
      %109 = vector.broadcast %cst_65 : f32 to vector<8x32xf32>
      %110 = arith.maximumf %108, %109 : vector<8x32xf32>
      scf.yield %110 : vector<8x32xf32>
    }
    %c10_i32_25 = arith.constant 10 : i32
    %c0_26 = arith.constant 0 : index
    %c0_27 = arith.constant 0 : index
    %21 = vector.load %arg20[%c0_26, %c0_27] : memref<32x10xf32, #tpu.memory_space<vmem>>, vector<32x10xf32>
    %cst_28 = arith.constant dense<0.000000e+00> : vector<8x10xf32>
    %22 = tpu.matmul %20, %21, %cst_28 {dimension_numbers = #tpu.dot_dimension_numbers<[1], [0], [0], [1], [0, 0, 1, 1], [], []>} : vector<8x32xf32>, vector<32x10xf32>, vector<8x10xf32> -> vector<8x10xf32>
    %c0_29 = arith.constant 0 : index
    %c0_30 = arith.constant 0 : index
    %23 = vector.load %arg21[%c0_29, %c0_30] : memref<1x10xf32, #tpu.memory_space<vmem>>, vector<1x10xf32>
    %24 = vector.broadcast %23 : vector<1x10xf32> to vector<8x10xf32>
    %25 = arith.addf %22, %24 : vector<8x10xf32>
    %c0_31 = arith.constant 0 : index
    %c0_32 = arith.constant 0 : index
    %c0_33 = arith.constant 0 : index
    %26 = vector.load %arg22[%c0_31, %c0_32, %c0_33] : memref<1x8x10xf32, #tpu.memory_space<vmem>>, vector<1x8x10xf32>
    %27 = vector.shape_cast %26 : vector<1x8x10xf32> to vector<8x10xf32>
    %28 = vector.shape_cast %25 : vector<8x10xf32> to vector<1x8x10xf32>
    tpu.vector_store %arg22[%c0_31, %c0_32, %c0_33], %28 {strides = array<i32>} : memref<1x8x10xf32, #tpu.memory_space<vmem>>, vector<1x8x10xf32>,
    return
  }
  func.func @transform_0(%arg0: i32) -> (i32, i32, i32) {
    %c0_i32 = arith.constant 0 : i32
    %c0_i32_0 = arith.constant 0 : i32
    %c0_i32_1 = arith.constant 0 : i32
    return %arg0, %c0_i32, %c0_i32_0 : i32, i32, i32
  }
  func.func @transform_1(%arg0: i32) -> (i32, i32, i32) {
    %c0_i32 = arith.constant 0 : i32
    %c0_i32_0 = arith.constant 0 : i32
    %c0_i32_1 = arith.constant 0 : i32
    return %arg0, %c0_i32, %c0_i32_0 : i32, i32, i32
  }
  func.func @transform_2(%arg0: i32) -> (i32, i32, i32) {
    %c0_i32 = arith.constant 0 : i32
    %c0_i32_0 = arith.constant 0 : i32
    %c0_i32_1 = arith.constant 0 : i32
    return %arg0, %c0_i32, %c0_i32_0 : i32, i32, i32
  }
  func.func @transform_3(%arg0: i32) -> (i32, i32) {
    %c0_i32 = arith.constant 0 : i32
    %c0_i32_0 = arith.constant 0 : i32
    %c0_i32_1 = arith.constant 0 : i32
    return %c0_i32, %c0_i32_0 : i32, i32
  }
  func.func @transform_4(%arg0: i32) -> (i32, i32) {
    %c0_i32 = arith.constant 0 : i32
    %c0_i32_0 = arith.constant 0 : i32
    %c0_i32_1 = arith.constant 0 : i32
    return %c0_i32, %c0_i32_0 : i32, i32
  }
  func.func @transform_5(%arg0: i32) -> (i32, i32) {
    %c0_i32 = arith.constant 0 : i32
    %c0_i32_0 = arith.constant 0 : i32
    %c0_i32_1 = arith.constant 0 : i32
    return %c0_i32, %c0_i32_0 : i32, i32
  }
  func.func @transform_6(%arg0: i32) -> (i32, i32) {
    %c0_i32 = arith.constant 0 : i32
    %c0_i32_0 = arith.constant 0 : i32
    %c0_i32_1 = arith.constant 0 : i32
    return %c0_i32, %c0_i32_0 : i32, i32
  }
  func.func @transform_7(%arg0: i32) -> (i32, i32) {
    %c0_i32 = arith.constant 0 : i32
    %c0_i32_0 = arith.constant 0 : i32
    %c0_i32_1 = arith.constant 0 : i32
    return %c0_i32, %c0_i32_0 : i32, i32
  }
  func.func @transform_8(%arg0: i32) -> (i32, i32) {
    %c0_i32 = arith.constant 0 : i32
    %c0_i32_0 = arith.constant 0 : i32
    %c0_i32_1 = arith.constant 0 : i32
    return %c0_i32, %c0_i32_0 : i32, i32
  }
  func.func @transform_9(%arg0: i32) -> (i32, i32) {
    %c0_i32 = arith.constant 0 : i32
    %c0_i32_0 = arith.constant 0 : i32
    %c0_i32_1 = arith.constant 0 : i32
    return %c0_i32, %c0_i32_0 : i32, i32
  }
  func.func @transform_10(%arg0: i32) -> (i32, i32) {
    %c0_i32 = arith.constant 0 : i32
    %c0_i32_0 = arith.constant 0 : i32
    %c0_i32_1 = arith.constant 0 : i32
    return %c0_i32, %c0_i32_0 : i32, i32
  }
  func.func @transform_11(%arg0: i32) -> (i32, i32, i32) {
    %c0_i32 = arith.constant 0 : i32
    %c0_i32_0 = arith.constant 0 : i32
    %c0_i32_1 = arith.constant 0 : i32
    %c0_i32_2 = arith.constant 0 : i32
    return %c0_i32, %c0_i32_0, %c0_i32_1 : i32, i32, i32
  }
  func.func @transform_12(%arg0: i32) -> (i32, i32, i32) {
    %c0_i32 = arith.constant 0 : i32
    %c0_i32_0 = arith.constant 0 : i32
    %c0_i32_1 = arith.constant 0 : i32
    %c0_i32_2 = arith.constant 0 : i32
    return %c0_i32, %c0_i32_0, %c0_i32_1 : i32, i32, i32
  }
  func.func @transform_13(%arg0: i32) -> (i32, i32, i32) {
    %c0_i32 = arith.constant 0 : i32
    %c0_i32_0 = arith.constant 0 : i32
    %c0_i32_1 = arith.constant 0 : i32
    %c0_i32_2 = arith.constant 0 : i32
    return %c0_i32, %c0_i32_0, %c0_i32_1 : i32, i32, i32
  }
  func.func @transform_14(%arg0: i32) -> (i32, i32, i32) {
    %c0_i32 = arith.constant 0 : i32
    %c0_i32_0 = arith.constant 0 : i32
    %c0_i32_1 = arith.constant 0 : i32
    %c0_i32_2 = arith.constant 0 : i32
    return %c0_i32, %c0_i32_0, %c0_i32_1 : i32, i32, i32
  }
  func.func @transform_15(%arg0: i32) -> (i32, i32, i32) {
    %c0_i32 = arith.constant 0 : i32
    %c0_i32_0 = arith.constant 0 : i32
    %c0_i32_1 = arith.constant 0 : i32
    %c0_i32_2 = arith.constant 0 : i32
    return %c0_i32, %c0_i32_0, %c0_i32_1 : i32, i32, i32
  }
  func.func @transform_16(%arg0: i32) -> (i32, i32, i32) {
    %c0_i32 = arith.constant 0 : i32
    %c0_i32_0 = arith.constant 0 : i32
    %c0_i32_1 = arith.constant 0 : i32
    %c0_i32_2 = arith.constant 0 : i32
    return %c0_i32, %c0_i32_0, %c0_i32_1 : i32, i32, i32
  }
  func.func @transform_17(%arg0: i32) -> (i32, i32, i32) {
    %c0_i32 = arith.constant 0 : i32
    %c0_i32_0 = arith.constant 0 : i32
    %c0_i32_1 = arith.constant 0 : i32
    %c0_i32_2 = arith.constant 0 : i32
    return %c0_i32, %c0_i32_0, %c0_i32_1 : i32, i32, i32
  }
  func.func @transform_18(%arg0: i32) -> (i32, i32, i32) {
    %c0_i32 = arith.constant 0 : i32
    %c0_i32_0 = arith.constant 0 : i32
    %c0_i32_1 = arith.constant 0 : i32
    %c0_i32_2 = arith.constant 0 : i32
    return %c0_i32, %c0_i32_0, %c0_i32_1 : i32, i32, i32
  }
  func.func @transform_19(%arg0: i32) -> (i32, i32) {
    %c0_i32 = arith.constant 0 : i32
    %c0_i32_0 = arith.constant 0 : i32
    %c0_i32_1 = arith.constant 0 : i32
    return %c0_i32, %c0_i32_0 : i32, i32
  }
  func.func @transform_20(%arg0: i32) -> (i32, i32) {
    %c0_i32 = arith.constant 0 : i32
    %c0_i32_0 = arith.constant 0 : i32
    %c0_i32_1 = arith.constant 0 : i32
    return %c0_i32, %c0_i32_0 : i32, i32
  }
  func.func @transform_21(%arg0: i32) -> (i32, i32, i32) {
    %c0_i32 = arith.constant 0 : i32
    %c0_i32_0 = arith.constant 0 : i32
    %c0_i32_1 = arith.constant 0 : i32
    return %arg0, %c0_i32, %c0_i32_0 : i32, i32, i32
  }
}

</mosaic_0001>

<llo_original>
// kernel: tile.19
$region0: #{tile.19}
  %s0 = inlined_call_operand.vmem [shape: f32[8,4,8], index: 0, kind: input, shape index: {}]
  %s1 = inlined_call_operand.vmem [shape: f32[8,32], index: 1, kind: output, shape index: {}]
  $region1: #{tile.19} parent=0
    #allocation0 [shape = 'u8[32768]{0}', space=vmem, size = 0x8000, scoped, tag = 'scoped mem for input reshape']
    %s3 = sshll.u32 1, 4
    %s4 = ssub.s32 %s3, 1
    %s5 = smul.addr 4, 7
    %s6 = scalar_lea.vmem %s0, %s5
    %v7 = vld [vmem:[%s6] sm:%s4]
    %s8 = scalar_lea.vmem [#allocation0], 56
    %9 = vst [vmem:[%s8] sm:%s4] %v7
    %s10 = smul.addr 4, 6
    %s11 = scalar_lea.vmem %s0, %s10
    %v12 = vld [vmem:[%s11] sm:%s4]
    %s13 = scalar_lea.vmem [#allocation0], 48
    %14 = vst [vmem:[%s13] sm:%s4] %v12
    %s15 = smul.addr 4, 5
    %s16 = scalar_lea.vmem %s0, %s15
    %v17 = vld [vmem:[%s16] sm:%s4]
    %s18 = scalar_lea.vmem [#allocation0], 40
    %19 = vst [vmem:[%s18] sm:%s4] %v17
    %s20 = smul.addr 4, 4
    %s21 = scalar_lea.vmem %s0, %s20
    %v22 = vld [vmem:[%s21] sm:%s4]
    %s23 = scalar_lea.vmem [#allocation0], 32
    %24 = vst [vmem:[%s23] sm:%s4] %v22
    %s25 = smul.addr 4, 3
    %s26 = scalar_lea.vmem %s0, %s25
    %v27 = vld [vmem:[%s26] sm:%s4]
    %s28 = scalar_lea.vmem [#allocation0], 24
    %29 = vst [vmem:[%s28] sm:%s4] %v27
    %s30 = smul.addr 4, 2
    %s31 = scalar_lea.vmem %s0, %s30
    %v32 = vld [vmem:[%s31] sm:%s4]
    %s33 = scalar_lea.vmem [#allocation0], 16
    %34 = vst [vmem:[%s33] sm:%s4] %v32
    %s35 = scalar_lea.vmem %s0, 4
    %v36 = vld [vmem:[%s35] sm:%s4]
    %s37 = scalar_lea.vmem [#allocation0], 8
    %38 = vst [vmem:[%s37] sm:%s4] %v36
    %v39 = vld [vmem:[%s0] sm:%s4]
    %40 = vst [vmem:[#allocation0] sm:%s4] %v39
    %v41 = vld [vmem:[#allocation0] ss:$8 sm:$0xf]
    %v42 = vld [vmem:[#allocation0] ss:$8 sm:$0xf0]
    %vm43 = vcmask 1047556
    %v44 = vsel %vm43, %v42, %v41
    %vm45 = vcmask 64512
    %46 = vst.msk [vmem:[%s1] sm:$0xff] %vm45, %v44
    %s47 = scalar_lea.vmem [#allocation0], 3
    %v48 = vld [vmem:[%s47] ss:$8 sm:$0xf]
    %s49 = scalar_lea.vmem [#allocation0], 3
    %v50 = vld [vmem:[%s49] ss:$8 sm:$0xf0]
    %vm51 = vcmask 1047556
    %v52 = vsel %vm51, %v50, %v48
    %53 = vrot.lane.b32.xlu0 %v52, 24
    %v54 = vpop.permute.xlu0 %53
    %vm55 = vcmask 261312
    %56 = vst.msk [vmem:[%s1] sm:$0xff] %vm55, %v54
    %s57 = scalar_lea.vmem [#allocation0], 2
    %v58 = vld [vmem:[%s57] ss:$8 sm:$0xf]
    %s59 = scalar_lea.vmem [#allocation0], 2
    %v60 = vld [vmem:[%s59] ss:$8 sm:$0xf0]
    %vm61 = vcmask 1047556
    %v62 = vsel %vm61, %v60, %v58
    %63 = vrot.lane.b32.xlu0 %v62, 16
    %v64 = vpop.permute.xlu0 %63
    %vm65 = vcmask 195712
    %66 = vst.msk [vmem:[%s1] sm:$0xff] %vm65, %v64
    %s67 = scalar_lea.vmem [#allocation0], 1
    %v68 = vld [vmem:[%s67] ss:$8 sm:$0xf]
    %s69 = scalar_lea.vmem [#allocation0], 1
    %v70 = vld [vmem:[%s69] ss:$8 sm:$0xf0]
    %vm71 = vcmask 1047556
    %v72 = vsel %vm71, %v70, %v68
    %73 = vrot.lane.b32.xlu0 %v72, 8
    %v74 = vpop.permute.xlu0 %73
    %vm75 = vcmask 130112
    %76 = vst.msk [vmem:[%s1] sm:$0xff] %vm75, %v74

// kernel: denosier_forward.1
$region0: #{denosier_forward.1}
  #allocation0 [shape = 'u32[]', space=smem, size = 0x4, offset = 0x4, fixed_abs, tag = 'smem constant byte address 0x4 - core index']
  #allocation1 [shape = 'u32[144,128]{1,0:T(1,128)}', space=vmem, size = 0x12000, scoped, tag = 'internal scratch']
  %s0 = inlined_call_operand.vmem [shape: f32[2,8,128], index: 0, kind: input, shape index: {}]
  %s1 = inlined_call_operand.vmem [shape: f32[2,8,10], index: 1, kind: input, shape index: {}]
  %s2 = inlined_call_operand.vmem [shape: f32[2,8,32], index: 2, kind: input, shape index: {}]
  %s3 = inlined_call_operand.vmem [shape: f32[8,32], index: 3, kind: input, shape index: {}]
  %s4 = inlined_call_operand.vmem [shape: f32[8,32], index: 4, kind: input, shape index: {}]
  %s5 = inlined_call_operand.vmem [shape: f32[32,32], index: 5, kind: input, shape index: {}]
  %s6 = inlined_call_operand.vmem [shape: f32[32,32], index: 6, kind: input, shape index: {}]
  %s7 = inlined_call_operand.vmem [shape: f32[8,32], index: 7, kind: input, shape index: {}]
  %s8 = inlined_call_operand.vmem [shape: f32[128,32], index: 8, kind: input, shape index: {}]
  %s9 = inlined_call_operand.vmem [shape: f32[10,32], index: 9, kind: input, shape index: {}]
  %s10 = inlined_call_operand.vmem [shape: f32[1,32], index: 10, kind: input, shape index: {}]
  %s11 = inlined_call_operand.vmem [shape: f32[10,32,32], index: 11, kind: input, shape index: {}]
  %s12 = inlined_call_operand.vmem [shape: f32[10,1,32], index: 12, kind: input, shape index: {}]
  %s13 = inlined_call_operand.vmem [shape: f32[10,32,32], index: 13, kind: input, shape index: {}]
  %s14 = inlined_call_operand.vmem [shape: f32[10,1,32], index: 14, kind: input, shape index: {}]
  %s15 = inlined_call_operand.vmem [shape: f32[10,32,32], index: 15, kind: input, shape index: {}]
  %s16 = inlined_call_operand.vmem [shape: f32[10,1,32], index: 16, kind: input, shape index: {}]
  %s17 = inlined_call_operand.vmem [shape: f32[10,1,32], index: 17, kind: input, shape index: {}]
  %s18 = inlined_call_operand.vmem [shape: f32[10,1,32], index: 18, kind: input, shape index: {}]
  %s19 = inlined_call_operand.vmem [shape: f32[32,10], index: 19, kind: input, shape index: {}]
  %s20 = inlined_call_operand.vmem [shape: f32[1,10], index: 20, kind: input, shape index: {}]
  %s21 = inlined_call_operand.hbm [shape: f32[2,8,10], index: 21, kind: output, shape index: {}]
  %s22 = sld [smem:[#allocation0]]
  $region124: #{denosier_forward.1} parent=0
    _
  %s24 = ssub.s32 1, %s22
  %s25 = scalar_select 0, %s24, %s22
  $region1: #{denosier_forward.1} parent=0
    #allocation2 [shape = 'u8[8192]{0}', space=vmem, size = 0x2000, scoped, tag = 'output window, operand 0']
    #allocation3 [shape = 's32[2]{0}', space=sflag, size = 0x8, scoped, tag = 'scoped memory for denosier_forward.1']
    %26 = vsyncpa [#allocation3], 0
    %s27 = scalar_lea.sflag [#allocation3], 1
    %28 = vsyncpa %s27, 0
    loop: start=0, step=1, limit=4
    $region2: #{denosier_forward.1} parent=1 // loop_pre_header
      _
    $region3: #{denosier_forward.1} parent=1 // loop_header
      %s30 = sphi 0, %s34
      %p31 = scmp.ge.s32.totalorder %s30, 4
      %s40 = sphi 0, %s42
      %s43 = sphi 0, %s40
      %s44 = sphi 0, %s43
      %s60 = sphi 0, %s44
      %s66 = sphi 0, %s68
      %s69 = sphi 0, %s66
      %s70 = sphi 0, %s69
      %s86 = sphi 0, %s70
      %s92 = sphi 0, %s94
      %s95 = sphi 0, %s92
      %s96 = sphi 0, %s95
      %s112 = sphi 0, %s96
      %s116 = sphi 0, %s116
      %s118 = sphi 0, %s116
      %s119 = sphi 0, %s118
      %s133 = sphi 0, %s119
      %s137 = sphi 0, %s137
      %s139 = sphi 0, %s137
      %s140 = sphi 0, %s139
      %s154 = sphi 0, %s140
      %s158 = sphi 0, %s158
      %s160 = sphi 0, %s158
      %s161 = sphi 0, %s160
      %s175 = sphi 0, %s161
      %s179 = sphi 0, %s179
      %s181 = sphi 0, %s179
      %s182 = sphi 0, %s181
      %s196 = sphi 0, %s182
      %s200 = sphi 0, %s200
      %s202 = sphi 0, %s200
      %s203 = sphi 0, %s202
      %s217 = sphi 0, %s203
      %s221 = sphi 0, %s221
      %s223 = sphi 0, %s221
      %s224 = sphi 0, %s223
      %s238 = sphi 0, %s224
      %s242 = sphi 0, %s242
      %s244 = sphi 0, %s242
      %s245 = sphi 0, %s244
      %s259 = sphi 0, %s245
      %s263 = sphi 0, %s263
      %s265 = sphi 0, %s263
      %s266 = sphi 0, %s265
      %s280 = sphi 0, %s266
      %s284 = sphi 0, %s284
      %s286 = sphi 0, %s284
      %s287 = sphi 0, %s286
      %s301 = sphi 0, %s287
      %s305 = sphi 0, %s305
      %s307 = sphi 0, %s305
      %s308 = sphi 0, %s307
      %s322 = sphi 0, %s308
      %s326 = sphi 0, %s326
      %s328 = sphi 0, %s326
      %s329 = sphi 0, %s328
      %s343 = sphi 0, %s329
      %s347 = sphi 0, %s347
      %s349 = sphi 0, %s347
      %s350 = sphi 0, %s349
      %s364 = sphi 0, %s350
      %s368 = sphi 0, %s368
      %s370 = sphi 0, %s368
      %s371 = sphi 0, %s370
      %s385 = sphi 0, %s371
      %s389 = sphi 0, %s389
      %s391 = sphi 0, %s389
      %s392 = sphi 0, %s391
      %s406 = sphi 0, %s392
      %s410 = sphi 0, %s410
      %s412 = sphi 0, %s410
      %s413 = sphi 0, %s412
      %s427 = sphi 0, %s413
      %s431 = sphi 0, %s431
      %s433 = sphi 0, %s431
      %s434 = sphi 0, %s433
      %s448 = sphi 0, %s434
      %s452 = sphi 0, %s452
      %s454 = sphi 0, %s452
      %s455 = sphi 0, %s454
      %s469 = sphi 0, %s455
      %s473 = sphi 0, %s473
      %s475 = sphi 0, %s473
      %s476 = sphi 0, %s475
      %s490 = sphi 0, %s476
      %s496 = sphi 0, %s498
      %s499 = sphi 0, %s496
      %s500 = sphi 0, %s499
      %s516 = sphi 0, %s500
    $region4: #{denosier_forward.1} parent=1 // loop_header_branch
      %33 = sbr.rel (%p31) target = $region8
    $region5: #{denosier_forward.1} parent=1 // loop_body
      %s35 = ssub.s32 %s30, 1
      %s36 = ssub.s32 %s30, 2
      %s37 = sadd.s32 %s30, 1
      %s38 = ssub.s32 %s30, %s37
      %p39 = scmp.eq.s32.totalorder %s38, 0
      %s41 = sadd.s32 %s40, 1
      %s42 = scalar_select %p39, %s40, %s41
      %p45 = pneg %p39
      %p46 = scmp.eq.s32.totalorder %s30, 1
      %p47 = por %p45, %p46
      %p48 = scmp.ne.s32.totalorder %s40, %s43
      %p49 = scmp.eq.s32.totalorder %s30, 0
      %p50 = por %p48, %p49
      %p51 = scmp.ne.s32.totalorder %s40, %s43
      %p52 = scmp.eq.s32.totalorder %s35, 1
      %p53 = por %p51, %p52
      %p54 = scmp.ne.s32.totalorder %s43, %s44
      %p55 = scmp.eq.s32.totalorder %s35, 0
      %p56 = por %p54, %p55
      %p57 = scmp.ne.s32.totalorder %s43, %s44
      %p58 = scmp.eq.s32.totalorder %s36, 1
      %p59 = por %p57, %p58
      %p61 = scmp.ne.s32.totalorder %s44, %s60
      %p62 = scmp.eq.s32.totalorder %s36, 0
      %p63 = por %p61, %p62
      %s64 = ssub.s32 %s30, %s37
      %p65 = scmp.eq.s32.totalorder %s64, 0
      %s67 = sadd.s32 %s66, 1
      %s68 = scalar_select %p65, %s66, %s67
      %p71 = pneg %p65
      %p72 = scmp.eq.s32.totalorder %s30, 1
      %p73 = por %p71, %p72
      %p74 = scmp.ne.s32.totalorder %s66, %s69
      %p75 = scmp.eq.s32.totalorder %s30, 0
      %p76 = por %p74, %p75
      %p77 = scmp.ne.s32.totalorder %s66, %s69
      %p78 = scmp.eq.s32.totalorder %s35, 1
      %p79 = por %p77, %p78
      %p80 = scmp.ne.s32.totalorder %s69, %s70
      %p81 = scmp.eq.s32.totalorder %s35, 0
      %p82 = por %p80, %p81
      %p83 = scmp.ne.s32.totalorder %s69, %s70
      %p84 = scmp.eq.s32.totalorder %s36, 1
      %p85 = por %p83, %p84
      %p87 = scmp.ne.s32.totalorder %s70, %s86
      %p88 = scmp.eq.s32.totalorder %s36, 0
      %p89 = por %p87, %p88
      %s90 = ssub.s32 %s30, %s37
      %p91 = scmp.eq.s32.totalorder %s90, 0
      %s93 = sadd.s32 %s92, 1
      %s94 = scalar_select %p91, %s92, %s93
      %p97 = pneg %p91
      %p98 = scmp.eq.s32.totalorder %s30, 1
      %p99 = por %p97, %p98
      %p100 = scmp.ne.s32.totalorder %s92, %s95
      %p101 = scmp.eq.s32.totalorder %s30, 0
      %p102 = por %p100, %p101
      %p103 = scmp.ne.s32.totalorder %s92, %s95
      %p104 = scmp.eq.s32.totalorder %s35, 1
      %p105 = por %p103, %p104
      %p106 = scmp.ne.s32.totalorder %s95, %s96
      %p107 = scmp.eq.s32.totalorder %s35, 0
      %p108 = por %p106, %p107
      %p109 = scmp.ne.s32.totalorder %s95, %s96
      %p110 = scmp.eq.s32.totalorder %s36, 1
      %p111 = por %p109, %p110
      %p113 = scmp.ne.s32.totalorder %s96, %s112
      %p114 = scmp.eq.s32.totalorder %s36, 0
      %p115 = por %p113, %p114
      %s117 = sadd.s32 %s116, 1
      %p120 = scmp.eq.s32.totalorder %s30, 1
      %p121 = scmp.ne.s32.totalorder %s116, %s118
      %p122 = scmp.eq.s32.totalorder %s30, 0
      %p123 = por %p121, %p122
      %p124 = scmp.ne.s32.totalorder %s116, %s118
      %p125 = scmp.eq.s32.totalorder %s35, 1
      %p126 = por %p124, %p125
      %p127 = scmp.ne.s32.totalorder %s118, %s119
      %p128 = scmp.eq.s32.totalorder %s35, 0
      %p129 = por %p127, %p128
      %p130 = scmp.ne.s32.totalorder %s118, %s119
      %p131 = scmp.eq.s32.totalorder %s36, 1
      %p132 = por %p130, %p131
      %p134 = scmp.ne.s32.totalorder %s119, %s133
      %p135 = scmp.eq.s32.totalorder %s36, 0
      %p136 = por %p134, %p135
      %s138 = sadd.s32 %s137, 1
      %p141 = scmp.eq.s32.totalorder %s30, 1
      %p142 = scmp.ne.s32.totalorder %s137, %s139
      %p143 = scmp.eq.s32.totalorder %s30, 0
      %p144 = por %p142, %p143
      %p145 = scmp.ne.s32.totalorder %s137, %s139
      %p146 = scmp.eq.s32.totalorder %s35, 1
      %p147 = por %p145, %p146
      %p148 = scmp.ne.s32.totalorder %s139, %s140
      %p149 = scmp.eq.s32.totalorder %s35, 0
      %p150 = por %p148, %p149
      %p151 = scmp.ne.s32.totalorder %s139, %s140
      %p152 = scmp.eq.s32.totalorder %s36, 1
      %p153 = por %p151, %p152
      %p155 = scmp.ne.s32.totalorder %s140, %s154
      %p156 = scmp.eq.s32.totalorder %s36, 0
      %p157 = por %p155, %p156
      %s159 = sadd.s32 %s158, 1
      %p162 = scmp.eq.s32.totalorder %s30, 1
      %p163 = scmp.ne.s32.totalorder %s158, %s160
      %p164 = scmp.eq.s32.totalorder %s30, 0
      %p165 = por %p163, %p164
      %p166 = scmp.ne.s32.totalorder %s158, %s160
      %p167 = scmp.eq.s32.totalorder %s35, 1
      %p168 = por %p166, %p167
      %p169 = scmp.ne.s32.totalorder %s160, %s161
      %p170 = scmp.eq.s32.totalorder %s35, 0
      %p171 = por %p169, %p170
      %p172 = scmp.ne.s32.totalorder %s160, %s161
      %p173 = scmp.eq.s32.totalorder %s36, 1
      %p174 = por %p172, %p173
      %p176 = scmp.ne.s32.totalorder %s161, %s175
      %p177 = scmp.eq.s32.totalorder %s36, 0
      %p178 = por %p176, %p177
      %s180 = sadd.s32 %s179, 1
      %p183 = scmp.eq.s32.totalorder %s30, 1
      %p184 = scmp.ne.s32.totalorder %s179, %s181
      %p185 = scmp.eq.s32.totalorder %s30, 0
      %p186 = por %p184, %p185
      %p187 = scmp.ne.s32.totalorder %s179, %s181
      %p188 = scmp.eq.s32.totalorder %s35, 1
      %p189 = por %p187, %p188
      %p190 = scmp.ne.s32.totalorder %s181, %s182
      %p191 = scmp.eq.s32.totalorder %s35, 0
      %p192 = por %p190, %p191
      %p193 = scmp.ne.s32.totalorder %s181, %s182
      %p194 = scmp.eq.s32.totalorder %s36, 1
      %p195 = por %p193, %p194
      %p197 = scmp.ne.s32.totalorder %s182, %s196
      %p198 = scmp.eq.s32.totalorder %s36, 0
      %p199 = por %p197, %p198
      %s201 = sadd.s32 %s200, 1
      %p204 = scmp.eq.s32.totalorder %s30, 1
      %p205 = scmp.ne.s32.totalorder %s200, %s202
      %p206 = scmp.eq.s32.totalorder %s30, 0
      %p207 = por %p205, %p206
      %p208 = scmp.ne.s32.totalorder %s200, %s202
      %p209 = scmp.eq.s32.totalorder %s35, 1
      %p210 = por %p208, %p209
      %p211 = scmp.ne.s32.totalorder %s202, %s203
      %p212 = scmp.eq.s32.totalorder %s35, 0
      %p213 = por %p211, %p212
      %p214 = scmp.ne.s32.totalorder %s202, %s203
      %p215 = scmp.eq.s32.totalorder %s36, 1
      %p216 = por %p214, %p215
      %p218 = scmp.ne.s32.totalorder %s203, %s217
      %p219 = scmp.eq.s32.totalorder %s36, 0
      %p220 = por %p218, %p219
      %s222 = sadd.s32 %s221, 1
      %p225 = scmp.eq.s32.totalorder %s30, 1
      %p226 = scmp.ne.s32.totalorder %s221, %s223
      %p227 = scmp.eq.s32.totalorder %s30, 0
      %p228 = por %p226, %p227
      %p229 = scmp.ne.s32.totalorder %s221, %s223
      %p230 = scmp.eq.s32.totalorder %s35, 1
      %p231 = por %p229, %p230
      %p232 = scmp.ne.s32.totalorder %s223, %s224
      %p233 = scmp.eq.s32.totalorder %s35, 0
      %p234 = por %p232, %p233
      %p235 = scmp.ne.s32.totalorder %s223, %s224
      %p236 = scmp.eq.s32.totalorder %s36, 1
      %p237 = por %p235, %p236
      %p239 = scmp.ne.s32.totalorder %s224, %s238
      %p240 = scmp.eq.s32.totalorder %s36, 0
      %p241 = por %p239, %p240
      %s243 = sadd.s32 %s242, 1
      %p246 = scmp.eq.s32.totalorder %s30, 1
      %p247 = scmp.ne.s32.totalorder %s242, %s244
      %p248 = scmp.eq.s32.totalorder %s30, 0
      %p249 = por %p247, %p248
      %p250 = scmp.ne.s32.totalorder %s242, %s244
      %p251 = scmp.eq.s32.totalorder %s35, 1
      %p252 = por %p250, %p251
      %p253 = scmp.ne.s32.totalorder %s244, %s245
      %p254 = scmp.eq.s32.totalorder %s35, 0
      %p255 = por %p253, %p254
      %p256 = scmp.ne.s32.totalorder %s244, %s245
      %p257 = scmp.eq.s32.totalorder %s36, 1
      %p258 = por %p256, %p257
      %p260 = scmp.ne.s32.totalorder %s245, %s259
      %p261 = scmp.eq.s32.totalorder %s36, 0
      %p262 = por %p260, %p261
      %s264 = sadd.s32 %s263, 1
      %p267 = scmp.eq.s32.totalorder %s30, 1
      %p268 = scmp.ne.s32.totalorder %s263, %s265
      %p269 = scmp.eq.s32.totalorder %s30, 0
      %p270 = por %p268, %p269
      %p271 = scmp.ne.s32.totalorder %s263, %s265
      %p272 = scmp.eq.s32.totalorder %s35, 1
      %p273 = por %p271, %p272
      %p274 = scmp.ne.s32.totalorder %s265, %s266
      %p275 = scmp.eq.s32.totalorder %s35, 0
      %p276 = por %p274, %p275
      %p277 = scmp.ne.s32.totalorder %s265, %s266
      %p278 = scmp.eq.s32.totalorder %s36, 1
      %p279 = por %p277, %p278
      %p281 = scmp.ne.s32.totalorder %s266, %s280
      %p282 = scmp.eq.s32.totalorder %s36, 0
      %p283 = por %p281, %p282
      %s285 = sadd.s32 %s284, 1
      %p288 = scmp.eq.s32.totalorder %s30, 1
      %p289 = scmp.ne.s32.totalorder %s284, %s286
      %p290 = scmp.eq.s32.totalorder %s30, 0
      %p291 = por %p289, %p290
      %p292 = scmp.ne.s32.totalorder %s284, %s286
      %p293 = scmp.eq.s32.totalorder %s35, 1
      %p294 = por %p292, %p293
      %p295 = scmp.ne.s32.totalorder %s286, %s287
      %p296 = scmp.eq.s32.totalorder %s35, 0
      %p297 = por %p295, %p296
      %p298 = scmp.ne.s32.totalorder %s286, %s287
      %p299 = scmp.eq.s32.totalorder %s36, 1
      %p300 = por %p298, %p299
      %p302 = scmp.ne.s32.totalorder %s287, %s301
      %p303 = scmp.eq.s32.totalorder %s36, 0
      %p304 = por %p302, %p303
      %s306 = sadd.s32 %s305, 1
      %p309 = scmp.eq.s32.totalorder %s30, 1
      %p310 = scmp.ne.s32.totalorder %s305, %s307
      %p311 = scmp.eq.s32.totalorder %s30, 0
      %p312 = por %p310, %p311
      %p313 = scmp.ne.s32.totalorder %s305, %s307
      %p314 = scmp.eq.s32.totalorder %s35, 1
      %p315 = por %p313, %p314
      %p316 = scmp.ne.s32.totalorder %s307, %s308
      %p317 = scmp.eq.s32.totalorder %s35, 0
      %p318 = por %p316, %p317
      %p319 = scmp.ne.s32.totalorder %s307, %s308
      %p320 = scmp.eq.s32.totalorder %s36, 1
      %p321 = por %p319, %p320
      %p323 = scmp.ne.s32.totalorder %s308, %s322
      %p324 = scmp.eq.s32.totalorder %s36, 0
      %p325 = por %p323, %p324
      %s327 = sadd.s32 %s326, 1
      %p330 = scmp.eq.s32.totalorder %s30, 1
      %p331 = scmp.ne.s32.totalorder %s326, %s328
      %p332 = scmp.eq.s32.totalorder %s30, 0
      %p333 = por %p331, %p332
      %p334 = scmp.ne.s32.totalorder %s326, %s328
      %p335 = scmp.eq.s32.totalorder %s35, 1
      %p336 = por %p334, %p335
      %p337 = scmp.ne.s32.totalorder %s328, %s329
      %p338 = scmp.eq.s32.totalorder %s35, 0
      %p339 = por %p337, %p338
      %p340 = scmp.ne.s32.totalorder %s328, %s329
      %p341 = scmp.eq.s32.totalorder %s36, 1
      %p342 = por %p340, %p341
      %p344 = scmp.ne.s32.totalorder %s329, %s343
      %p345 = scmp.eq.s32.totalorder %s36, 0
      %p346 = por %p344, %p345
      %s348 = sadd.s32 %s347, 1
      %p351 = scmp.eq.s32.totalorder %s30, 1
      %p352 = scmp.ne.s32.totalorder %s347, %s349
      %p353 = scmp.eq.s32.totalorder %s30, 0
      %p354 = por %p352, %p353
      %p355 = scmp.ne.s32.totalorder %s347, %s349
      %p356 = scmp.eq.s32.totalorder %s35, 1
      %p357 = por %p355, %p356
      %p358 = scmp.ne.s32.totalorder %s349, %s350
      %p359 = scmp.eq.s32.totalorder %s35, 0
      %p360 = por %p358, %p359
      %p361 = scmp.ne.s32.totalorder %s349, %s350
      %p362 = scmp.eq.s32.totalorder %s36, 1
      %p363 = por %p361, %p362
      %p365 = scmp.ne.s32.totalorder %s350, %s364
      %p366 = scmp.eq.s32.totalorder %s36, 0
      %p367 = por %p365, %p366
      %s369 = sadd.s32 %s368, 1
      %p372 = scmp.eq.s32.totalorder %s30, 1
      %p373 = scmp.ne.s32.totalorder %s368, %s370
      %p374 = scmp.eq.s32.totalorder %s30, 0
      %p375 = por %p373, %p374
      %p376 = scmp.ne.s32.totalorder %s368, %s370
      %p377 = scmp.eq.s32.totalorder %s35, 1
      %p378 = por %p376, %p377
      %p379 = scmp.ne.s32.totalorder %s370, %s371
      %p380 = scmp.eq.s32.totalorder %s35, 0
      %p381 = por %p379, %p380
      %p382 = scmp.ne.s32.totalorder %s370, %s371
      %p383 = scmp.eq.s32.totalorder %s36, 1
      %p384 = por %p382, %p383
      %p386 = scmp.ne.s32.totalorder %s371, %s385
      %p387 = scmp.eq.s32.totalorder %s36, 0
      %p388 = por %p386, %p387
      %s390 = sadd.s32 %s389, 1
      %p393 = scmp.eq.s32.totalorder %s30, 1
      %p394 = scmp.ne.s32.totalorder %s389, %s391
      %p395 = scmp.eq.s32.totalorder %s30, 0
      %p396 = por %p394, %p395
      %p397 = scmp.ne.s32.totalorder %s389, %s391
      %p398 = scmp.eq.s32.totalorder %s35, 1
      %p399 = por %p397, %p398
      %p400 = scmp.ne.s32.totalorder %s391, %s392
      %p401 = scmp.eq.s32.totalorder %s35, 0
      %p402 = por %p400, %p401
      %p403 = scmp.ne.s32.totalorder %s391, %s392
      %p404 = scmp.eq.s32.totalorder %s36, 1
      %p405 = por %p403, %p404
      %p407 = scmp.ne.s32.totalorder %s392, %s406
      %p408 = scmp.eq.s32.totalorder %s36, 0
      %p409 = por %p407, %p408
      %s411 = sadd.s32 %s410, 1
      %p414 = scmp.eq.s32.totalorder %s30, 1
      %p415 = scmp.ne.s32.totalorder %s410, %s412
      %p416 = scmp.eq.s32.totalorder %s30, 0
      %p417 = por %p415, %p416
      %p418 = scmp.ne.s32.totalorder %s410, %s412
      %p419 = scmp.eq.s32.totalorder %s35, 1
      %p420 = por %p418, %p419
      %p421 = scmp.ne.s32.totalorder %s412, %s413
      %p422 = scmp.eq.s32.totalorder %s35, 0
      %p423 = por %p421, %p422
      %p424 = scmp.ne.s32.totalorder %s412, %s413
      %p425 = scmp.eq.s32.totalorder %s36, 1
      %p426 = por %p424, %p425
      %p428 = scmp.ne.s32.totalorder %s413, %s427
      %p429 = scmp.eq.s32.totalorder %s36, 0
      %p430 = por %p428, %p429
      %s432 = sadd.s32 %s431, 1
      %p435 = scmp.eq.s32.totalorder %s30, 1
      %p436 = scmp.ne.s32.totalorder %s431, %s433
      %p437 = scmp.eq.s32.totalorder %s30, 0
      %p438 = por %p436, %p437
      %p439 = scmp.ne.s32.totalorder %s431, %s433
      %p440 = scmp.eq.s32.totalorder %s35, 1
      %p441 = por %p439, %p440
      %p442 = scmp.ne.s32.totalorder %s433, %s434
      %p443 = scmp.eq.s32.totalorder %s35, 0
      %p444 = por %p442, %p443
      %p445 = scmp.ne.s32.totalorder %s433, %s434
      %p446 = scmp.eq.s32.totalorder %s36, 1
      %p447 = por %p445, %p446
      %p449 = scmp.ne.s32.totalorder %s434, %s448
      %p450 = scmp.eq.s32.totalorder %s36, 0
      %p451 = por %p449, %p450
      %s453 = sadd.s32 %s452, 1
      %p456 = scmp.eq.s32.totalorder %s30, 1
      %p457 = scmp.ne.s32.totalorder %s452, %s454
      %p458 = scmp.eq.s32.totalorder %s30, 0
      %p459 = por %p457, %p458
      %p460 = scmp.ne.s32.totalorder %s452, %s454
      %p461 = scmp.eq.s32.totalorder %s35, 1
      %p462 = por %p460, %p461
      %p463 = scmp.ne.s32.totalorder %s454, %s455
      %p464 = scmp.eq.s32.totalorder %s35, 0
      %p465 = por %p463, %p464
      %p466 = scmp.ne.s32.totalorder %s454, %s455
      %p467 = scmp.eq.s32.totalorder %s36, 1
      %p468 = por %p466, %p467
      %p470 = scmp.ne.s32.totalorder %s455, %s469
      %p471 = scmp.eq.s32.totalorder %s36, 0
      %p472 = por %p470, %p471
      %s474 = sadd.s32 %s473, 1
      %p477 = scmp.eq.s32.totalorder %s30, 1
      %p478 = scmp.ne.s32.totalorder %s473, %s475
      %p479 = scmp.eq.s32.totalorder %s30, 0
      %p480 = por %p478, %p479
      %p481 = scmp.ne.s32.totalorder %s473, %s475
      %p482 = scmp.eq.s32.totalorder %s35, 1
      %p483 = por %p481, %p482
      %p484 = scmp.ne.s32.totalorder %s475, %s476
      %p485 = scmp.eq.s32.totalorder %s35, 0
      %p486 = por %p484, %p485
      %p487 = scmp.ne.s32.totalorder %s475, %s476
      %p488 = scmp.eq.s32.totalorder %s36, 1
      %p489 = por %p487, %p488
      %p491 = scmp.ne.s32.totalorder %s476, %s490
      %p492 = scmp.eq.s32.totalorder %s36, 0
      %p493 = por %p491, %p492
      %s494 = ssub.s32 %s30, %s37
      %p495 = scmp.eq.s32.totalorder %s494, 0
      %s497 = sadd.s32 %s496, 1
      %s498 = scalar_select %p495, %s496, %s497
      %p501 = pneg %p495
      %p502 = scmp.eq.s32.totalorder %s30, 1
      %p503 = por %p501, %p502
      %p504 = scmp.ne.s32.totalorder %s496, %s499
      %p505 = scmp.eq.s32.totalorder %s30, 0
      %p506 = por %p504, %p505
      %p507 = scmp.ne.s32.totalorder %s496, %s499
      %p508 = scmp.eq.s32.totalorder %s35, 1
      %p509 = por %p507, %p508
      %p510 = scmp.ne.s32.totalorder %s499, %s500
      %p511 = scmp.eq.s32.totalorder %s35, 0
      %p512 = por %p510, %p511
      %p513 = scmp.ne.s32.totalorder %s499, %s500
      %p514 = scmp.eq.s32.totalorder %s36, 1
      %p515 = por %p513, %p514
      %p517 = scmp.ne.s32.totalorder %s500, %s516
      %p518 = scmp.eq.s32.totalorder %s36, 0
      %p519 = por %p517, %p518
      %p520 = scmp.le.s32.totalorder 1, %s30
      %p521 = scmp.lt.s32.totalorder %s30, 3
      %p522 = pnand %p520, %p521
      %p523 = pneg %p522
      // Predicated region
      $region9: #{denosier_forward.1} parent=5 // pred_check
        _
      $region10: #{denosier_forward.1} parent=5 // pred_check_branch
        %525 = sbr.rel (%p522) target = $region12
      $region11: #{denosier_forward.1} parent=5 // pred_region
        %s526 = ssub.s32 %s30, 1
        // Predicated region
        $region13: #{denosier_forward.1} parent=11 // pred_check
          %p527 = pneg %p129
        $region14: #{denosier_forward.1} parent=11 // pred_check_branch
          %529 = sbr.rel (%p527) target = $region16
        $region15: #{denosier_forward.1} parent=11 // pred_region
          _
        $region16: #{denosier_forward.1} parent=11 // pred_fallthru
          _
        // Predicated region
        $region17: #{denosier_forward.1} parent=11 // pred_check
          %p530 = pneg %p150
        $region18: #{denosier_forward.1} parent=11 // pred_check_branch
          %532 = sbr.rel (%p530) target = $region20
        $region19: #{denosier_forward.1} parent=11 // pred_region
          _
        $region20: #{denosier_forward.1} parent=11 // pred_fallthru
          _
        // Predicated region
        $region21: #{denosier_forward.1} parent=11 // pred_check
          %p533 = pneg %p171
        $region22: #{denosier_forward.1} parent=11 // pred_check_branch
          %535 = sbr.rel (%p533) target = $region24
        $region23: #{denosier_forward.1} parent=11 // pred_region
          _
        $region24: #{denosier_forward.1} parent=11 // pred_fallthru
          _
        // Predicated region
        $region25: #{denosier_forward.1} parent=11 // pred_check
          %p536 = pneg %p192
        $region26: #{denosier_forward.1} parent=11 // pred_check_branch
          %538 = sbr.rel (%p536) target = $region28
        $region27: #{denosier_forward.1} parent=11 // pred_region
          _
        $region28: #{denosier_forward.1} parent=11 // pred_fallthru
          _
        // Predicated region
        $region29: #{denosier_forward.1} parent=11 // pred_check
          %p539 = pneg %p213
        $region30: #{denosier_forward.1} parent=11 // pred_check_branch
          %541 = sbr.rel (%p539) target = $region32
        $region31: #{denosier_forward.1} parent=11 // pred_region
          _
        $region32: #{denosier_forward.1} parent=11 // pred_fallthru
          _
        // Predicated region
        $region33: #{denosier_forward.1} parent=11 // pred_check
          %p542 = pneg %p234
        $region34: #{denosier_forward.1} parent=11 // pred_check_branch
          %544 = sbr.rel (%p542) target = $region36
        $region35: #{denosier_forward.1} parent=11 // pred_region
          _
        $region36: #{denosier_forward.1} parent=11 // pred_fallthru
          _
        // Predicated region
        $region37: #{denosier_forward.1} parent=11 // pred_check
          %p545 = pneg %p255
        $region38: #{denosier_forward.1} parent=11 // pred_check_branch
          %547 = sbr.rel (%p545) target = $region40
        $region39: #{denosier_forward.1} parent=11 // pred_region
          _
        $region40: #{denosier_forward.1} parent=11 // pred_fallthru
          _
        // Predicated region
        $region41: #{denosier_forward.1} parent=11 // pred_check
          %p548 = pneg %p276
        $region42: #{denosier_forward.1} parent=11 // pred_check_branch
          %550 = sbr.rel (%p548) target = $region44
        $region43: #{denosier_forward.1} parent=11 // pred_region
          _
        $region44: #{denosier_forward.1} parent=11 // pred_fallthru
          _
        // Predicated region
        $region45: #{denosier_forward.1} parent=11 // pred_check
          %p551 = pneg %p297
        $region46: #{denosier_forward.1} parent=11 // pred_check_branch
          %553 = sbr.rel (%p551) target = $region48
        $region47: #{denosier_forward.1} parent=11 // pred_region
          _
        $region48: #{denosier_forward.1} parent=11 // pred_fallthru
          _
        // Predicated region
        $region49: #{denosier_forward.1} parent=11 // pred_check
          %p554 = pneg %p318
        $region50: #{denosier_forward.1} parent=11 // pred_check_branch
          %556 = sbr.rel (%p554) target = $region52
        $region51: #{denosier_forward.1} parent=11 // pred_region
          _
        $region52: #{denosier_forward.1} parent=11 // pred_fallthru
          _
        // Predicated region
        $region53: #{denosier_forward.1} parent=11 // pred_check
          %p557 = pneg %p339
        $region54: #{denosier_forward.1} parent=11 // pred_check_branch
          %559 = sbr.rel (%p557) target = $region56
        $region55: #{denosier_forward.1} parent=11 // pred_region
          _
        $region56: #{denosier_forward.1} parent=11 // pred_fallthru
          _
        // Predicated region
        $region57: #{denosier_forward.1} parent=11 // pred_check
          %p560 = pneg %p360
        $region58: #{denosier_forward.1} parent=11 // pred_check_branch
          %562 = sbr.rel (%p560) target = $region60
        $region59: #{denosier_forward.1} parent=11 // pred_region
          _
        $region60: #{denosier_forward.1} parent=11 // pred_fallthru
          _
        // Predicated region
        $region61: #{denosier_forward.1} parent=11 // pred_check
          %p563 = pneg %p381
        $region62: #{denosier_forward.1} parent=11 // pred_check_branch
          %565 = sbr.rel (%p563) target = $region64
        $region63: #{denosier_forward.1} parent=11 // pred_region
          _
        $region64: #{denosier_forward.1} parent=11 // pred_fallthru
          _
        // Predicated region
        $region65: #{denosier_forward.1} parent=11 // pred_check
          %p566 = pneg %p402
        $region66: #{denosier_forward.1} parent=11 // pred_check_branch
          %568 = sbr.rel (%p566) target = $region68
        $region67: #{denosier_forward.1} parent=11 // pred_region
          _
        $region68: #{denosier_forward.1} parent=11 // pred_fallthru
          _
        // Predicated region
        $region69: #{denosier_forward.1} parent=11 // pred_check
          %p569 = pneg %p423
        $region70: #{denosier_forward.1} parent=11 // pred_check_branch
          %571 = sbr.rel (%p569) target = $region72
        $region71: #{denosier_forward.1} parent=11 // pred_region
          _
        $region72: #{denosier_forward.1} parent=11 // pred_fallthru
          _
        // Predicated region
        $region73: #{denosier_forward.1} parent=11 // pred_check
          %p572 = pneg %p444
        $region74: #{denosier_forward.1} parent=11 // pred_check_branch
          %574 = sbr.rel (%p572) target = $region76
        $region75: #{denosier_forward.1} parent=11 // pred_region
          _
        $region76: #{denosier_forward.1} parent=11 // pred_fallthru
          _
        // Predicated region
        $region77: #{denosier_forward.1} parent=11 // pred_check
          %p575 = pneg %p465
        $region78: #{denosier_forward.1} parent=11 // pred_check_branch
          %577 = sbr.rel (%p575) target = $region80
        $region79: #{denosier_forward.1} parent=11 // pred_region
          _
        $region80: #{denosier_forward.1} parent=11 // pred_fallthru
          _
        // Predicated region
        $region81: #{denosier_forward.1} parent=11 // pred_check
          %p578 = pneg %p486
        $region82: #{denosier_forward.1} parent=11 // pred_check_branch
          %580 = sbr.rel (%p578) target = $region84
        $region83: #{denosier_forward.1} parent=11 // pred_region
          _
        $region84: #{denosier_forward.1} parent=11 // pred_fallthru
          _
      $region12: #{denosier_forward.1} parent=5 // pred_fallthru
        _
      %p581 = scmp.lt.s32.totalorder %s30, 2
      // Predicated region
      $region85: #{denosier_forward.1} parent=5 // pred_check
        %p582 = pneg %p581
      $region86: #{denosier_forward.1} parent=5 // pred_check_branch
        %584 = sbr.rel (%p582) target = $region88
      $region87: #{denosier_forward.1} parent=5 // pred_region
        // Predicated region
        $region89: #{denosier_forward.1} parent=87 // pred_check
          %p585 = pneg %p50
        $region90: #{denosier_forward.1} parent=87 // pred_check_branch
          %587 = sbr.rel (%p585) target = $region92
        $region91: #{denosier_forward.1} parent=87 // pred_region
          %p588 = scmp.lt.s32.totalorder %s30, 1
          %s589 = scalar_select %p588, %s30, 1
          %s590 = smul.addr %s589, 8
          %s591 = scalar_lea.vmem %s0, %s590
        $region92: #{denosier_forward.1} parent=87 // pred_fallthru
          _
        // Predicated region
        $region93: #{denosier_forward.1} parent=87 // pred_check
          %p592 = pneg %p76
        $region94: #{denosier_forward.1} parent=87 // pred_check_branch
          %594 = sbr.rel (%p592) target = $region96
        $region95: #{denosier_forward.1} parent=87 // pred_region
          %p595 = scmp.lt.s32.totalorder %s30, 1
          %s596 = scalar_select %p595, %s30, 1
          %s597 = smul.addr %s596, 8
          %s598 = scalar_lea.vmem %s1, %s597
        $region96: #{denosier_forward.1} parent=87 // pred_fallthru
          _
        // Predicated region
        $region97: #{denosier_forward.1} parent=87 // pred_check
          %p599 = pneg %p102
        $region98: #{denosier_forward.1} parent=87 // pred_check_branch
          %601 = sbr.rel (%p599) target = $region100
        $region99: #{denosier_forward.1} parent=87 // pred_region
          %p602 = scmp.lt.s32.totalorder %s30, 1
          %s603 = scalar_select %p602, %s30, 1
          %s604 = smul.addr %s603, 8
          %s605 = scalar_lea.vmem %s2, %s604
        $region100: #{denosier_forward.1} parent=87 // pred_fallthru
          _
      $region88: #{denosier_forward.1} parent=5 // pred_fallthru
        _
      %p606 = scmp.le.s32.totalorder 1, %s30
      %p607 = scmp.lt.s32.totalorder %s30, 3
      %p608 = pnand %p606, %p607
      %p609 = pneg %p608
      // Predicated region
      $region101: #{denosier_forward.1} parent=5 // pred_check
        _
      $region102: #{denosier_forward.1} parent=5 // pred_check_branch
        %611 = sbr.rel (%p608) target = $region104
      $region103: #{denosier_forward.1} parent=5 // pred_region
        %s612 = ssub.s32 %s30, 1
        %p613 = scmp.lt.s32.totalorder %s35, 1
        %s614 = scalar_select %p613, %s35, 1
        %s615 = smul.addr %s614, 8
        %s616 = scalar_lea.vmem %s0, %s615
        %p617 = pneg %p56
        %p618 = pneg %p53
        %p619 = scmp.lt.s32.totalorder %s35, 1
        %s620 = scalar_select %p619, %s35, 1
        %s621 = smul.addr %s620, 8
        %s622 = scalar_lea.vmem %s1, %s621
        %p623 = pneg %p82
        %p624 = pneg %p79
        %p625 = scmp.lt.s32.totalorder %s35, 1
        %s626 = scalar_select %p625, %s35, 1
        %s627 = smul.addr %s626, 8
        %s628 = scalar_lea.vmem %s2, %s627
        %p629 = pneg %p108
        %p630 = pneg %p105
        %p631 = pneg %p129
        %p632 = pneg %p126
        %p633 = pneg %p150
        %p634 = pneg %p147
        %p635 = pneg %p171
        %p636 = pneg %p168
        %p637 = pneg %p192
        %p638 = pneg %p189
        %p639 = pneg %p213
        %p640 = pneg %p210
        %p641 = pneg %p234
        %p642 = pneg %p231
        %p643 = pneg %p255
        %p644 = pneg %p252
        %p645 = pneg %p276
        %p646 = pneg %p273
        %p647 = pneg %p297
        %p648 = pneg %p294
        %p649 = pneg %p318
        %p650 = pneg %p315
        %p651 = pneg %p339
        %p652 = pneg %p336
        %p653 = pneg %p360
        %p654 = pneg %p357
        %p655 = pneg %p381
        %p656 = pneg %p378
        %p657 = pneg %p402
        %p658 = pneg %p399
        %p659 = pneg %p423
        %p660 = pneg %p420
        %p661 = pneg %p444
        %p662 = pneg %p441
        %p663 = pneg %p465
        %p664 = pneg %p462
        %p665 = pneg %p486
        %p666 = pneg %p483
        %p667 = pneg %p512
        %p668 = pneg %p509
        %s669 = sand.u32 %s499, 1
        %s670 = scalar_lea.sflag [#allocation3], %s669
        %s671 = sand.u32 %s499, 1
        %s672 = smul.addr %s671, 8
        %s673 = scalar_lea.vmem [#allocation2], %s672
        %p674 = scmp.lt.s32.totalorder %s35, 1
        %s675 = scalar_select %p674, %s35, 1
        %s676 = smul.addr %s675, 8
        %s677 = scalar_lea.vmem %s0, %s676
        %p678 = scmp.lt.s32.totalorder %s35, 1
        %s679 = scalar_select %p678, %s35, 1
        %s680 = smul.addr %s679, 8
        %s681 = scalar_lea.vmem %s1, %s680
        %p682 = scmp.lt.s32.totalorder %s35, 1
        %s683 = scalar_select %p682, %s35, 1
        %s684 = smul.addr %s683, 8
        %s685 = scalar_lea.vmem %s2, %s684
        %v686 = vld [vmem:[%s677] sm:$0xff]
        %v687 = vld [vmem:[%s681] sm:$0xff]
        %v688 = vld [vmem:[%s685] sm:$0xff]
        %v689 = vld [vmem:[%s3] sm:$0xff]
        %v690 = vld [vmem:[%s4] sm:$0xff]
        %v691 = vld [vmem:[%s5] sm:$0xff]
        %v692 = vld [vmem:[%s5 + $0x8] sm:$0xff]
        %v693 = vld [vmem:[%s5 + $0x10] sm:$0xff]
        %v694 = vld [vmem:[%s5 + $0x18] sm:$0xff]
        %v695 = vld [vmem:[%s6] sm:$0xff]
        %v696 = vld [vmem:[%s6 + $0x8] sm:$0xff]
        %v697 = vld [vmem:[%s6 + $0x10] sm:$0xff]
        %v698 = vld [vmem:[%s6 + $0x18] sm:$0xff]
        %v699 = vld [vmem:[%s7] sm:$0xff]
        %v700 = vld [vmem:[%s8] sm:$0xff]
        %v701 = vld [vmem:[%s8 + $0x8] sm:$0xff]
        %v702 = vld [vmem:[%s8 + $0x10] sm:$0xff]
        %v703 = vld [vmem:[%s8 + $0x18] sm:$0xff]
        %v704 = vld [vmem:[%s8 + $0x20] sm:$0xff]
        %v705 = vld [vmem:[%s8 + $0x28] sm:$0xff]
        %v706 = vld [vmem:[%s8 + $0x30] sm:$0xff]
        %v707 = vld [vmem:[%s8 + $0x38] sm:$0xff]
        %v708 = vld [vmem:[%s8 + $0x40] sm:$0xff]
        %v709 = vld [vmem:[%s8 + $0x48] sm:$0xff]
        %v710 = vld [vmem:[%s8 + $0x50] sm:$0xff]
        %v711 = vld [vmem:[%s8 + $0x58] sm:$0xff]
        %v712 = vld [vmem:[%s8 + $0x60] sm:$0xff]
        %v713 = vld [vmem:[%s8 + $0x68] sm:$0xff]
        %v714 = vld [vmem:[%s8 + $0x70] sm:$0xff]
        %v715 = vld [vmem:[%s8 + $0x78] sm:$0xff]
        %v716 = vld [vmem:[%s9] sm:$0xff]
        %v717 = vld [vmem:[%s9 + $0x8] sm:$0x3]
        %vm718 = vcmask 80896
        %v720 = vsel %vm718, %v687, 0
        %vm722 = vcmask 1041408
        %v724 = vsel %vm722, %v717, 0
        %726 = vmatprep.subr.mxu0 0.0
        %727 = vmatpush1.msra.mxu0 0.0
        %728 = vmatprep.subr.mxu0 0.0
        %729 = vmatpush1.msra.mxu0 0.0
        %730 = vmatprep.subr.mxu0 0.0
        %731 = vmatpush1.msra.mxu0 0.0
        %732 = vmatprep.subr.mxu0 0.0
        %733 = vmatpush1.msra.mxu0 0.0
        %734 = vmatprep.subr.mxu0 0.0
        %735 = vmatpush1.msra.mxu0 0.0
        %736 = vmatprep.subr.mxu0 0.0
        %737 = vmatpush1.msra.mxu0 0.0
        %738 = vmatprep.subr.mxu0 0.0
        %739 = vmatpush1.msra.mxu0 0.0
        %740 = vmatprep.subr.mxu0 0.0
        %741 = vmatpush1.msra.mxu0 0.0
        %742 = vmatprep.subr.mxu0 0.0
        %743 = vmatpush1.msra.mxu0 0.0
        %744 = vmatprep.subr.mxu0 0.0
        %745 = vmatpush1.msra.mxu0 0.0
        %746 = vmatprep.subr.mxu0 0.0
        %747 = vmatpush1.msra.mxu0 0.0
        %748 = vmatprep.subr.mxu0 0.0
        %749 = vmatpush1.msra.mxu0 0.0
        %750 = vmatprep.subr.mxu0 0.0
        %751 = vmatpush1.msra.mxu0 0.0
        %752 = vmatprep.subr.mxu0 0.0
        %753 = vmatpush1.msra.mxu0 0.0
        %754 = vmatprep.subr.mxu0 0.0
        %755 = vmatpush1.msra.mxu0 %v724
        %756 = vmatprep.subr.mxu0 0.0
        %757 = vmatpush1.msra.mxu0 %v716
        %758 = vmatprep.subr.mxu0 0.0
        %759 = vmatpush2.msra.mxu0 0.0
        %760 = vmatprep.subr.mxu0 0.0
        %761 = vmatpush2.msra.mxu0 0.0
        %762 = vmatprep.subr.mxu0 0.0
        %763 = vmatpush2.msra.mxu0 0.0
        %764 = vmatprep.subr.mxu0 0.0
        %765 = vmatpush2.msra.mxu0 0.0
        %766 = vmatprep.subr.mxu0 0.0
        %767 = vmatpush2.msra.mxu0 0.0
        %768 = vmatprep.subr.mxu0 0.0
        %769 = vmatpush2.msra.mxu0 0.0
        %770 = vmatprep.subr.mxu0 0.0
        %771 = vmatpush2.msra.mxu0 0.0
        %772 = vmatprep.subr.mxu0 0.0
        %773 = vmatpush2.msra.mxu0 0.0
        %774 = vmatprep.subr.mxu0 0.0
        %775 = vmatpush2.msra.mxu0 0.0
        %776 = vmatprep.subr.mxu0 0.0
        %777 = vmatpush2.msra.mxu0 0.0
        %778 = vmatprep.subr.mxu0 0.0
        %779 = vmatpush2.msra.mxu0 0.0
        %780 = vmatprep.subr.mxu0 0.0
        %781 = vmatpush2.msra.mxu0 0.0
        %782 = vmatprep.subr.mxu0 0.0
        %783 = vmatpush2.msra.mxu0 0.0
        %784 = vmatprep.subr.mxu0 0.0
        %785 = vmatpush2.msra.mxu0 0.0
        %786 = vmatprep.subr.mxu0 0.0
        %787 = vmatpush2.msra.mxu0 0.0
        %788 = vmatprep.subr.mxu0 0.0
        %789 = vmatpush2.msra.mxu0 0.0
        %790 = vmatprep.mubr.f32.mxu0 0.0
        %791 = vmatmul.mubr.f32.gmra.mxu0 %v720
        %v792 = vpop.f32.mrf.mxu0
        %v793 = vadd.f32 0.0, %v792
        %v794 = vpop.f32.mrf.mxu0
        %795 = vdwg.mxu0
        %796 = vmatprep.subr.mxu0 0.0
        %797 = vmatpush1.msra.mxu0 %v715
        %798 = vmatprep.subr.mxu0 0.0
        %799 = vmatpush1.msra.mxu0 %v714
        %800 = vmatprep.subr.mxu0 0.0
        %801 = vmatpush1.msra.mxu0 %v713
        %802 = vmatprep.subr.mxu0 0.0
        %803 = vmatpush1.msra.mxu0 %v712
        %804 = vmatprep.subr.mxu0 0.0
        %805 = vmatpush1.msra.mxu0 %v711
        %806 = vmatprep.subr.mxu0 0.0
        %807 = vmatpush1.msra.mxu0 %v710
        %808 = vmatprep.subr.mxu0 0.0
        %809 = vmatpush1.msra.mxu0 %v709
        %810 = vmatprep.subr.mxu0 0.0
        %811 = vmatpush1.msra.mxu0 %v708
        %812 = vmatprep.subr.mxu0 0.0
        %813 = vmatpush1.msra.mxu0 %v707
        %814 = vmatprep.subr.mxu0 0.0
        %815 = vmatpush1.msra.mxu0 %v706
        %816 = vmatprep.subr.mxu0 0.0
        %817 = vmatpush1.msra.mxu0 %v705
        %818 = vmatprep.subr.mxu0 0.0
        %819 = vmatpush1.msra.mxu0 %v704
        %820 = vmatprep.subr.mxu0 0.0
        %821 = vmatpush1.msra.mxu0 %v703
        %822 = vmatprep.subr.mxu0 0.0
        %823 = vmatpush1.msra.mxu0 %v702
        %824 = vmatprep.subr.mxu0 0.0
        %825 = vmatpush1.msra.mxu0 %v701
        %826 = vmatprep.subr.mxu0 0.0
        %827 = vmatpush1.msra.mxu0 %v700
        %828 = vmatprep.subr.mxu0 0.0
        %829 = vmatpush2.msra.mxu0 0.0
        %830 = vmatprep.subr.mxu0 0.0
        %831 = vmatpush2.msra.mxu0 0.0
        %832 = vmatprep.subr.mxu0 0.0
        %833 = vmatpush2.msra.mxu0 0.0
        %834 = vmatprep.subr.mxu0 0.0
        %835 = vmatpush2.msra.mxu0 0.0
        %836 = vmatprep.subr.mxu0 0.0
        %837 = vmatpush2.msra.mxu0 0.0
        %838 = vmatprep.subr.mxu0 0.0
        %839 = vmatpush2.msra.mxu0 0.0
        %840 = vmatprep.subr.mxu0 0.0
        %841 = vmatpush2.msra.mxu0 0.0
        %842 = vmatprep.subr.mxu0 0.0
        %843 = vmatpush2.msra.mxu0 0.0
        %844 = vmatprep.subr.mxu0 0.0
        %845 = vmatpush2.msra.mxu0 0.0
        %846 = vmatprep.subr.mxu0 0.0
        %847 = vmatpush2.msra.mxu0 0.0
        %848 = vmatprep.subr.mxu0 0.0
        %849 = vmatpush2.msra.mxu0 0.0
        %850 = vmatprep.subr.mxu0 0.0
        %851 = vmatpush2.msra.mxu0 0.0
        %852 = vmatprep.subr.mxu0 0.0
        %853 = vmatpush2.msra.mxu0 0.0
        %854 = vmatprep.subr.mxu0 0.0
        %855 = vmatpush2.msra.mxu0 0.0
        %856 = vmatprep.subr.mxu0 0.0
        %857 = vmatpush2.msra.mxu0 0.0
        %858 = vmatprep.subr.mxu0 0.0
        %859 = vmatpush2.msra.mxu0 0.0
        %860 = vmatprep.mubr.f32.mxu0 0.0
        %861 = vmatmul.mubr.f32.gmra.mxu0 %v686
        %v862 = vpop.f32.mrf.mxu0
        %v863 = vadd.f32 %v793, %v862
        %v864 = vpop.f32.mrf.mxu0
        %865 = vdwg.mxu0
        %v866 = vld [vmem:[%s10] sm:$0x1]
        %v868 = vlaneseq
        %v869 = vshrl.u32 %v868, 7
        %v870 = vsub.s32 0, %v869
        %v871 = vrot.slane %v866, %v870
        %v873 = vadd.f32 %v863, %v871
        loop: start=0, step=1, limit=10
        $region105: #{denosier_forward.1} parent=103 // loop_pre_header
          _
        $region106: #{denosier_forward.1} parent=103 // loop_header
          %s875 = sphi 0, %s879
          %p876 = scmp.ge.s32.totalorder %s875, 10
          %v880 = vphi %v873, %v1577
        $region107: #{denosier_forward.1} parent=103 // loop_header_branch
          %878 = sbr.rel (%p876) target = $region111
        $region108: #{denosier_forward.1} parent=103 // loop_body
          %s881 = smul.u32 %s875, 32
          %s882 = scalar_lea.vmem %s11, %s881
          %v883 = vld [vmem:[%s882] sm:$0xff]
          %v884 = vld [vmem:[%s882 + $0x8] sm:$0xff]
          %v885 = vld [vmem:[%s882 + $0x10] sm:$0xff]
          %v886 = vld [vmem:[%s882 + $0x18] sm:$0xff]
          %s887 = scalar_lea.vmem %s12, %s875
          %v888 = vld [vmem:[%s887] sm:$0x1]
          %v890 = vlaneseq
          %v891 = vshrl.u32 %v890, 7
          %v892 = vsub.s32 0, %v891
          %v893 = vrot.slane %v888, %v892
          %vm895 = vcmask 261120
          %v897 = vsel %vm895, %v688, 0
          %899 = vmatprep.subr.mxu0 0.0
          %900 = vmatpush1.msra.mxu0 0.0
          %901 = vmatprep.subr.mxu0 0.0
          %902 = vmatpush1.msra.mxu0 0.0
          %903 = vmatprep.subr.mxu0 0.0
          %904 = vmatpush1.msra.mxu0 0.0
          %905 = vmatprep.subr.mxu0 0.0
          %906 = vmatpush1.msra.mxu0 0.0
          %907 = vmatprep.subr.mxu0 0.0
          %908 = vmatpush1.msra.mxu0 0.0
          %909 = vmatprep.subr.mxu0 0.0
          %910 = vmatpush1.msra.mxu0 0.0
          %911 = vmatprep.subr.mxu0 0.0
          %912 = vmatpush1.msra.mxu0 0.0
          %913 = vmatprep.subr.mxu0 0.0
          %914 = vmatpush1.msra.mxu0 0.0
          %915 = vmatprep.subr.mxu0 0.0
          %916 = vmatpush1.msra.mxu0 0.0
          %917 = vmatprep.subr.mxu0 0.0
          %918 = vmatpush1.msra.mxu0 0.0
          %919 = vmatprep.subr.mxu0 0.0
          %920 = vmatpush1.msra.mxu0 0.0
          %921 = vmatprep.subr.mxu0 0.0
          %922 = vmatpush1.msra.mxu0 0.0
          %923 = vmatprep.subr.mxu0 0.0
          %924 = vmatpush1.msra.mxu0 %v886
          %925 = vmatprep.subr.mxu0 0.0
          %926 = vmatpush1.msra.mxu0 %v885
          %927 = vmatprep.subr.mxu0 0.0
          %928 = vmatpush1.msra.mxu0 %v884
          %929 = vmatprep.subr.mxu0 0.0
          %930 = vmatpush1.msra.mxu0 %v883
          %931 = vmatprep.subr.mxu0 0.0
          %932 = vmatpush2.msra.mxu0 0.0
          %933 = vmatprep.subr.mxu0 0.0
          %934 = vmatpush2.msra.mxu0 0.0
          %935 = vmatprep.subr.mxu0 0.0
          %936 = vmatpush2.msra.mxu0 0.0
          %937 = vmatprep.subr.mxu0 0.0
          %938 = vmatpush2.msra.mxu0 0.0
          %939 = vmatprep.subr.mxu0 0.0
          %940 = vmatpush2.msra.mxu0 0.0
          %941 = vmatprep.subr.mxu0 0.0
          %942 = vmatpush2.msra.mxu0 0.0
          %943 = vmatprep.subr.mxu0 0.0
          %944 = vmatpush2.msra.mxu0 0.0
          %945 = vmatprep.subr.mxu0 0.0
          %946 = vmatpush2.msra.mxu0 0.0
          %947 = vmatprep.subr.mxu0 0.0
          %948 = vmatpush2.msra.mxu0 0.0
          %949 = vmatprep.subr.mxu0 0.0
          %950 = vmatpush2.msra.mxu0 0.0
          %951 = vmatprep.subr.mxu0 0.0
          %952 = vmatpush2.msra.mxu0 0.0
          %953 = vmatprep.subr.mxu0 0.0
          %954 = vmatpush2.msra.mxu0 0.0
          %955 = vmatprep.subr.mxu0 0.0
          %956 = vmatpush2.msra.mxu0 0.0
          %957 = vmatprep.subr.mxu0 0.0
          %958 = vmatpush2.msra.mxu0 0.0
          %959 = vmatprep.subr.mxu0 0.0
          %960 = vmatpush2.msra.mxu0 0.0
          %961 = vmatprep.subr.mxu0 0.0
          %962 = vmatpush2.msra.mxu0 0.0
          %963 = vmatprep.mubr.f32.mxu0 0.0
          %964 = vmatmul.mubr.f32.gmra.mxu0 %v897
          %v965 = vpop.f32.mrf.mxu0
          %v966 = vadd.f32 %v893, %v965
          %v967 = vpop.f32.mrf.mxu0
          %968 = vdwg.mxu0
          %s969 = scalar_lea.vmem %s13, %s881
          %v970 = vld [vmem:[%s969] sm:$0xff]
          %v971 = vld [vmem:[%s969 + $0x8] sm:$0xff]
          %v972 = vld [vmem:[%s969 + $0x10] sm:$0xff]
          %v973 = vld [vmem:[%s969 + $0x18] sm:$0xff]
          %s974 = scalar_lea.vmem %s14, %s875
          %v975 = vld [vmem:[%s974] sm:$0x1]
          %v977 = vlaneseq
          %v978 = vshrl.u32 %v977, 7
          %v979 = vsub.s32 0, %v978
          %v980 = vrot.slane %v975, %v979
          %v983 = vsel %vm895, %v880, 0
          %985 = vmatprep.subr.mxu0 0.0
          %986 = vmatpush1.msra.mxu0 0.0
          %987 = vmatprep.subr.mxu0 0.0
          %988 = vmatpush1.msra.mxu0 0.0
          %989 = vmatprep.subr.mxu0 0.0
          %990 = vmatpush1.msra.mxu0 0.0
          %991 = vmatprep.subr.mxu0 0.0
          %992 = vmatpush1.msra.mxu0 0.0
          %993 = vmatprep.subr.mxu0 0.0
          %994 = vmatpush1.msra.mxu0 0.0
          %995 = vmatprep.subr.mxu0 0.0
          %996 = vmatpush1.msra.mxu0 0.0
          %997 = vmatprep.subr.mxu0 0.0
          %998 = vmatpush1.msra.mxu0 0.0
          %999 = vmatprep.subr.mxu0 0.0
          %1000 = vmatpush1.msra.mxu0 0.0
          %1001 = vmatprep.subr.mxu0 0.0
          %1002 = vmatpush1.msra.mxu0 0.0
          %1003 = vmatprep.subr.mxu0 0.0
          %1004 = vmatpush1.msra.mxu0 0.0
          %1005 = vmatprep.subr.mxu0 0.0
          %1006 = vmatpush1.msra.mxu0 0.0
          %1007 = vmatprep.subr.mxu0 0.0
          %1008 = vmatpush1.msra.mxu0 0.0
          %1009 = vmatprep.subr.mxu0 0.0
          %1010 = vmatpush1.msra.mxu0 %v973
          %1011 = vmatprep.subr.mxu0 0.0
          %1012 = vmatpush1.msra.mxu0 %v972
          %1013 = vmatprep.subr.mxu0 0.0
          %1014 = vmatpush1.msra.mxu0 %v971
          %1015 = vmatprep.subr.mxu0 0.0
          %1016 = vmatpush1.msra.mxu0 %v970
          %1017 = vmatprep.subr.mxu0 0.0
          %1018 = vmatpush2.msra.mxu0 0.0
          %1019 = vmatprep.subr.mxu0 0.0
          %1020 = vmatpush2.msra.mxu0 0.0
          %1021 = vmatprep.subr.mxu0 0.0
          %1022 = vmatpush2.msra.mxu0 0.0
          %1023 = vmatprep.subr.mxu0 0.0
          %1024 = vmatpush2.msra.mxu0 0.0
          %1025 = vmatprep.subr.mxu0 0.0
          %1026 = vmatpush2.msra.mxu0 0.0
          %1027 = vmatprep.subr.mxu0 0.0
          %1028 = vmatpush2.msra.mxu0 0.0
          %1029 = vmatprep.subr.mxu0 0.0
          %1030 = vmatpush2.msra.mxu0 0.0
          %1031 = vmatprep.subr.mxu0 0.0
          %1032 = vmatpush2.msra.mxu0 0.0
          %1033 = vmatprep.subr.mxu0 0.0
          %1034 = vmatpush2.msra.mxu0 0.0
          %1035 = vmatprep.subr.mxu0 0.0
          %1036 = vmatpush2.msra.mxu0 0.0
          %1037 = vmatprep.subr.mxu0 0.0
          %1038 = vmatpush2.msra.mxu0 0.0
          %1039 = vmatprep.subr.mxu0 0.0
          %1040 = vmatpush2.msra.mxu0 0.0
          %1041 = vmatprep.subr.mxu0 0.0
          %1042 = vmatpush2.msra.mxu0 0.0
          %1043 = vmatprep.subr.mxu0 0.0
          %1044 = vmatpush2.msra.mxu0 0.0
          %1045 = vmatprep.subr.mxu0 0.0
          %1046 = vmatpush2.msra.mxu0 0.0
          %1047 = vmatprep.subr.mxu0 0.0
          %1048 = vmatpush2.msra.mxu0 0.0
          %1049 = vmatprep.mubr.f32.mxu0 0.0
          %1050 = vmatmul.mubr.f32.gmra.mxu0 %v983
          %v1051 = vpop.f32.mrf.mxu0
          %v1052 = vadd.f32 %v980, %v1051
          %v1053 = vpop.f32.mrf.mxu0
          %1054 = vdwg.mxu0
          %v1055 = vmul.f32 %v966, %v689
          %v1057 = vsel %vm895, %v966, 0
          %1059 = vmatprep.subr.mxu0 0.0
          %1060 = vmatpush1.msra.mxu0 0.0
          %1061 = vmatprep.subr.mxu0 0.0
          %1062 = vmatpush1.msra.mxu0 0.0
          %1063 = vmatprep.subr.mxu0 0.0
          %1064 = vmatpush1.msra.mxu0 0.0
          %1065 = vmatprep.subr.mxu0 0.0
          %1066 = vmatpush1.msra.mxu0 0.0
          %1067 = vmatprep.subr.mxu0 0.0
          %1068 = vmatpush1.msra.mxu0 0.0
          %1069 = vmatprep.subr.mxu0 0.0
          %1070 = vmatpush1.msra.mxu0 0.0
          %1071 = vmatprep.subr.mxu0 0.0
          %1072 = vmatpush1.msra.mxu0 0.0
          %1073 = vmatprep.subr.mxu0 0.0
          %1074 = vmatpush1.msra.mxu0 0.0
          %1075 = vmatprep.subr.mxu0 0.0
          %1076 = vmatpush1.msra.mxu0 0.0
          %1077 = vmatprep.subr.mxu0 0.0
          %1078 = vmatpush1.msra.mxu0 0.0
          %1079 = vmatprep.subr.mxu0 0.0
          %1080 = vmatpush1.msra.mxu0 0.0
          %1081 = vmatprep.subr.mxu0 0.0
          %1082 = vmatpush1.msra.mxu0 0.0
          %1083 = vmatprep.subr.mxu0 0.0
          %1084 = vmatpush1.msra.mxu0 %v694
          %1085 = vmatprep.subr.mxu0 0.0
          %1086 = vmatpush1.msra.mxu0 %v693
          %1087 = vmatprep.subr.mxu0 0.0
          %1088 = vmatpush1.msra.mxu0 %v692
          %1089 = vmatprep.subr.mxu0 0.0
          %1090 = vmatpush1.msra.mxu0 %v691
          %1091 = vmatprep.subr.mxu0 0.0
          %1092 = vmatpush2.msra.mxu0 0.0
          %1093 = vmatprep.subr.mxu0 0.0
          %1094 = vmatpush2.msra.mxu0 0.0
          %1095 = vmatprep.subr.mxu0 0.0
          %1096 = vmatpush2.msra.mxu0 0.0
          %1097 = vmatprep.subr.mxu0 0.0
          %1098 = vmatpush2.msra.mxu0 0.0
          %1099 = vmatprep.subr.mxu0 0.0
          %1100 = vmatpush2.msra.mxu0 0.0
          %1101 = vmatprep.subr.mxu0 0.0
          %1102 = vmatpush2.msra.mxu0 0.0
          %1103 = vmatprep.subr.mxu0 0.0
          %1104 = vmatpush2.msra.mxu0 0.0
          %1105 = vmatprep.subr.mxu0 0.0
          %1106 = vmatpush2.msra.mxu0 0.0
          %1107 = vmatprep.subr.mxu0 0.0
          %1108 = vmatpush2.msra.mxu0 0.0
          %1109 = vmatprep.subr.mxu0 0.0
          %1110 = vmatpush2.msra.mxu0 0.0
          %1111 = vmatprep.subr.mxu0 0.0
          %1112 = vmatpush2.msra.mxu0 0.0
          %1113 = vmatprep.subr.mxu0 0.0
          %1114 = vmatpush2.msra.mxu0 0.0
          %1115 = vmatprep.subr.mxu0 0.0
          %1116 = vmatpush2.msra.mxu0 0.0
          %1117 = vmatprep.subr.mxu0 0.0
          %1118 = vmatpush2.msra.mxu0 0.0
          %1119 = vmatprep.subr.mxu0 0.0
          %1120 = vmatpush2.msra.mxu0 0.0
          %1121 = vmatprep.subr.mxu0 0.0
          %1122 = vmatpush2.msra.mxu0 0.0
          %1123 = vmatprep.mubr.f32.mxu0 0.0
          %1124 = vmatmul.mubr.f32.gmra.mxu0 %v1057
          %v1125 = vpop.f32.mrf.mxu0
          %v1126 = vadd.f32 0.0, %v1125
          %v1127 = vpop.f32.mrf.mxu0
          %1128 = vdwg.mxu0
          %v1129 = vmul.f32 %v1126, %v690
          %v1130 = vadd.f32 %v1055, %v1129
          %v1131 = vmul.f32 %v1130, %v695
          %v1132 = vmul.f32 %v1130, %v696
          %v1133 = vmul.f32 %v1130, %v697
          %v1134 = vmul.f32 %v1130, %v698
          %v1136 = vsel %vm895, %v1131, 0
          %v1139 = vsel %vm895, %v1132, 0
          %v1142 = vsel %vm895, %v1133, 0
          %v1145 = vsel %vm895, %v1134, 0
          %v1148 = vsel %vm895, %v1052, 0
          %1150 = vmatprep.subr.mxu0 0.0
          %1151 = vmatpush1.xpose.msra.mxu0 0.0
          %1152 = vmatprep.subr.mxu0 0.0
          %1153 = vmatpush1.xpose.msra.mxu0 0.0
          %1154 = vmatprep.subr.mxu0 0.0
          %1155 = vmatpush1.xpose.msra.mxu0 0.0
          %1156 = vmatprep.subr.mxu0 0.0
          %1157 = vmatpush1.xpose.msra.mxu0 0.0
          %1158 = vmatprep.subr.mxu0 0.0
          %1159 = vmatpush1.xpose.msra.mxu0 0.0
          %1160 = vmatprep.subr.mxu0 0.0
          %1161 = vmatpush1.xpose.msra.mxu0 0.0
          %1162 = vmatprep.subr.mxu0 0.0
          %1163 = vmatpush1.xpose.msra.mxu0 0.0
          %1164 = vmatprep.subr.mxu0 0.0
          %1165 = vmatpush1.xpose.msra.mxu0 0.0
          %1166 = vmatprep.subr.mxu0 0.0
          %1167 = vmatpush1.xpose.msra.mxu0 0.0
          %1168 = vmatprep.subr.mxu0 0.0
          %1169 = vmatpush1.xpose.msra.mxu0 0.0
          %1170 = vmatprep.subr.mxu0 0.0
          %1171 = vmatpush1.xpose.msra.mxu0 0.0
          %1172 = vmatprep.subr.mxu0 0.0
          %1173 = vmatpush1.xpose.msra.mxu0 0.0
          %1174 = vmatprep.subr.mxu0 0.0
          %1175 = vmatpush1.xpose.msra.mxu0 0.0
          %1176 = vmatprep.subr.mxu0 0.0
          %1177 = vmatpush1.xpose.msra.mxu0 0.0
          %1178 = vmatprep.subr.mxu0 0.0
          %1179 = vmatpush1.xpose.msra.mxu0 0.0
          %1180 = vmatprep.subr.mxu0 0.0
          %1181 = vmatpush1.xpose.msra.mxu0 %v1148
          %1182 = vmatprep.subr.mxu0 0.0
          %1183 = vmatpush2.xpose.msra.mxu0 0.0
          %1184 = vmatprep.subr.mxu0 0.0
          %1185 = vmatpush2.xpose.msra.mxu0 0.0
          %1186 = vmatprep.subr.mxu0 0.0
          %1187 = vmatpush2.xpose.msra.mxu0 0.0
          %1188 = vmatprep.subr.mxu0 0.0
          %1189 = vmatpush2.xpose.msra.mxu0 0.0
          %1190 = vmatprep.subr.mxu0 0.0
          %1191 = vmatpush2.xpose.msra.mxu0 0.0
          %1192 = vmatprep.subr.mxu0 0.0
          %1193 = vmatpush2.xpose.msra.mxu0 0.0
          %1194 = vmatprep.subr.mxu0 0.0
          %1195 = vmatpush2.xpose.msra.mxu0 0.0
          %1196 = vmatprep.subr.mxu0 0.0
          %1197 = vmatpush2.xpose.msra.mxu0 0.0
          %1198 = vmatprep.subr.mxu0 0.0
          %1199 = vmatpush2.xpose.msra.mxu0 0.0
          %1200 = vmatprep.subr.mxu0 0.0
          %1201 = vmatpush2.xpose.msra.mxu0 0.0
          %1202 = vmatprep.subr.mxu0 0.0
          %1203 = vmatpush2.xpose.msra.mxu0 0.0
          %1204 = vmatprep.subr.mxu0 0.0
          %1205 = vmatpush2.xpose.msra.mxu0 0.0
          %1206 = vmatprep.subr.mxu0 0.0
          %1207 = vmatpush2.xpose.msra.mxu0 0.0
          %1208 = vmatprep.subr.mxu0 0.0
          %1209 = vmatpush2.xpose.msra.mxu0 0.0
          %1210 = vmatprep.subr.mxu0 0.0
          %1211 = vmatpush2.xpose.msra.mxu0 0.0
          %1212 = vmatprep.subr.mxu0 0.0
          %1213 = vmatpush2.xpose.msra.mxu0 0.0
          %1214 = vmatprep.mubr.f32.mxu0 0.0
          %1215 = vmatmul.mubr.f32.gmra.mxu0 %v1136
          %v1216 = vpop.f32.mrf.mxu0
          %v1217 = vadd.f32 0.0, %v1216
          %v1218 = vpop.f32.mrf.mxu0
          %1219 = vmatprep.mubr.f32.mxu0 0.0
          %1220 = vmatmul.mubr.f32.gmra.mxu0 %v1139
          %v1221 = vpop.f32.mrf.mxu0
          %v1222 = vadd.f32 0.0, %v1221
          %v1223 = vpop.f32.mrf.mxu0
          %1224 = vmatprep.mubr.f32.mxu0 0.0
          %1225 = vmatmul.mubr.f32.gmra.mxu0 %v1142
          %v1226 = vpop.f32.mrf.mxu0
          %v1227 = vadd.f32 0.0, %v1226
          %v1228 = vpop.f32.mrf.mxu0
          %1229 = vmatprep.mubr.f32.mxu0 0.0
          %1230 = vmatmul.mubr.f32.gmra.mxu0 %v1145
          %v1231 = vpop.f32.mrf.mxu0
          %v1232 = vadd.f32 0.0, %v1231
          %v1233 = vpop.f32.mrf.mxu0
          %1234 = vdwg.mxu0
          %v1235 = vmul.f32 %v1217, 0.35355338
          %v1236 = vmul.f32 %v1222, 0.35355338
          %v1237 = vmul.f32 %v1227, 0.35355338
          %v1238 = vmul.f32 %v1232, 0.35355338
          %vm1239 = vcmask 64512
          %v1240 = vsel %vm1239, %v1235, -inf
          %1241 = vmax.xlane.f32.xlu0 %v1240
          %v1242 = vpop.xlane.xlu0 %1241
          %v1243 = vsel %vm1239, %v1236, -inf
          %1244 = vmax.xlane.f32.xlu0 %v1243
          %v1245 = vpop.xlane.xlu0 %1244
          %v1246 = vsel %vm1239, %v1237, -inf
          %1247 = vmax.xlane.f32.xlu0 %v1246
          %v1248 = vpop.xlane.xlu0 %1247
          %v1249 = vsel %vm1239, %v1238, -inf
          %1250 = vmax.xlane.f32.xlu0 %v1249
          %v1251 = vpop.xlane.xlu0 %1250
          %v1252 = vsub.f32 %v1235, %v1242
          %v1253 = vsub.f32 %v1236, %v1245
          %v1254 = vsub.f32 %v1237, %v1248
          %v1255 = vsub.f32 %v1238, %v1251
          %v1256 = vmul.f32 %v1252, 1.442695
          %v1257 = vpow.pop %v1256
          %v1258 = vmul.f32 %v1253, 1.442695
          %v1259 = vpow.pop %v1258
          %v1260 = vmul.f32 %v1254, 1.442695
          %v1261 = vpow.pop %v1260
          %v1262 = vmul.f32 %v1255, 1.442695
          %v1263 = vpow.pop %v1262
          %v1264 = vsel %vm1239, %v1257, 0.0
          %1265 = vadd.xlane.f32.xlu0 %v1264
          %v1266 = vpop.xlane.xlu0 %1265
          %v1267 = vsel %vm1239, %v1259, 0.0
          %1268 = vadd.xlane.f32.xlu0 %v1267
          %v1269 = vpop.xlane.xlu0 %1268
          %v1270 = vsel %vm1239, %v1261, 0.0
          %1271 = vadd.xlane.f32.xlu0 %v1270
          %v1272 = vpop.xlane.xlu0 %1271
          %v1273 = vsel %vm1239, %v1263, 0.0
          %1274 = vadd.xlane.f32.xlu0 %v1273
          %v1275 = vpop.xlane.xlu0 %1274
          %v1276 = vrcp.pop %v1266
          %v1277 = vmul.f32 %v1257, %v1276
          %v1278 = vrcp.pop %v1269
          %v1279 = vmul.f32 %v1259, %v1278
          %v1280 = vrcp.pop %v1272
          %v1281 = vmul.f32 %v1261, %v1280
          %v1282 = vrcp.pop %v1275
          %v1283 = vmul.f32 %v1263, %v1282
          %v1285 = vsel %vm1239, %v1277, 0
          %v1288 = vsel %vm1239, %v1279, 0
          %v1291 = vsel %vm1239, %v1281, 0
          %v1294 = vsel %vm1239, %v1283, 0
          %1296 = vmatprep.subr.mxu0 0.0
          %1297 = vmatpush1.msra.mxu0 0.0
          %1298 = vmatprep.subr.mxu0 0.0
          %1299 = vmatpush1.msra.mxu0 0.0
          %1300 = vmatprep.subr.mxu0 0.0
          %1301 = vmatpush1.msra.mxu0 0.0
          %1302 = vmatprep.subr.mxu0 0.0
          %1303 = vmatpush1.msra.mxu0 0.0
          %1304 = vmatprep.subr.mxu0 0.0
          %1305 = vmatpush1.msra.mxu0 0.0
          %1306 = vmatprep.subr.mxu0 0.0
          %1307 = vmatpush1.msra.mxu0 0.0
          %1308 = vmatprep.subr.mxu0 0.0
          %1309 = vmatpush1.msra.mxu0 0.0
          %1310 = vmatprep.subr.mxu0 0.0
          %1311 = vmatpush1.msra.mxu0 0.0
          %1312 = vmatprep.subr.mxu0 0.0
          %1313 = vmatpush1.msra.mxu0 0.0
          %1314 = vmatprep.subr.mxu0 0.0
          %1315 = vmatpush1.msra.mxu0 0.0
          %1316 = vmatprep.subr.mxu0 0.0
          %1317 = vmatpush1.msra.mxu0 0.0
          %1318 = vmatprep.subr.mxu0 0.0
          %1319 = vmatpush1.msra.mxu0 0.0
          %1320 = vmatprep.subr.mxu0 0.0
          %1321 = vmatpush1.msra.mxu0 0.0
          %1322 = vmatprep.subr.mxu0 0.0
          %1323 = vmatpush1.msra.mxu0 0.0
          %1324 = vmatprep.subr.mxu0 0.0
          %1325 = vmatpush1.msra.mxu0 0.0
          %1326 = vmatprep.subr.mxu0 0.0
          %1327 = vmatpush1.msra.mxu0 %v1052
          %1328 = vmatprep.subr.mxu0 0.0
          %1329 = vmatpush2.msra.mxu0 0.0
          %1330 = vmatprep.subr.mxu0 0.0
          %1331 = vmatpush2.msra.mxu0 0.0
          %1332 = vmatprep.subr.mxu0 0.0
          %1333 = vmatpush2.msra.mxu0 0.0
          %1334 = vmatprep.subr.mxu0 0.0
          %1335 = vmatpush2.msra.mxu0 0.0
          %1336 = vmatprep.subr.mxu0 0.0
          %1337 = vmatpush2.msra.mxu0 0.0
          %1338 = vmatprep.subr.mxu0 0.0
          %1339 = vmatpush2.msra.mxu0 0.0
          %1340 = vmatprep.subr.mxu0 0.0
          %1341 = vmatpush2.msra.mxu0 0.0
          %1342 = vmatprep.subr.mxu0 0.0
          %1343 = vmatpush2.msra.mxu0 0.0
          %1344 = vmatprep.subr.mxu0 0.0
          %1345 = vmatpush2.msra.mxu0 0.0
          %1346 = vmatprep.subr.mxu0 0.0
          %1347 = vmatpush2.msra.mxu0 0.0
          %1348 = vmatprep.subr.mxu0 0.0
          %1349 = vmatpush2.msra.mxu0 0.0
          %1350 = vmatprep.subr.mxu0 0.0
          %1351 = vmatpush2.msra.mxu0 0.0
          %1352 = vmatprep.subr.mxu0 0.0
          %1353 = vmatpush2.msra.mxu0 0.0
          %1354 = vmatprep.subr.mxu0 0.0
          %1355 = vmatpush2.msra.mxu0 0.0
          %1356 = vmatprep.subr.mxu0 0.0
          %1357 = vmatpush2.msra.mxu0 0.0
          %1358 = vmatprep.subr.mxu0 0.0
          %1359 = vmatpush2.msra.mxu0 0.0
          %1360 = vmatprep.mubr.f32.mxu0 0.0
          %1361 = vmatmul.mubr.f32.gmra.mxu0 %v1285
          %v1362 = vpop.f32.mrf.mxu0
          %v1363 = vadd.f32 0.0, %v1362
          %v1364 = vpop.f32.mrf.mxu0
          %1365 = vmatprep.mubr.f32.mxu0 0.0
          %1366 = vmatmul.mubr.f32.gmra.mxu0 %v1288
          %v1367 = vpop.f32.mrf.mxu0
          %v1368 = vadd.f32 0.0, %v1367
          %v1369 = vpop.f32.mrf.mxu0
          %1370 = vmatprep.mubr.f32.mxu0 0.0
          %1371 = vmatmul.mubr.f32.gmra.mxu0 %v1291
          %v1372 = vpop.f32.mrf.mxu0
          %v1373 = vadd.f32 0.0, %v1372
          %v1374 = vpop.f32.mrf.mxu0
          %1375 = vmatprep.mubr.f32.mxu0 0.0
          %1376 = vmatmul.mubr.f32.gmra.mxu0 %v1294
          %v1377 = vpop.f32.mrf.mxu0
          %v1378 = vadd.f32 0.0, %v1377
          %v1379 = vpop.f32.mrf.mxu0
          %1380 = vdwg.mxu0
          %v1381 = vmul.f32 %v1363, %v695
          %v1382 = vmul.f32 %v1368, %v696
          %v1383 = vmul.f32 %v1373, %v697
          %v1384 = vmul.f32 %v1378, %v698
          %v1386 = vsel %vm895, %v699, 0
          %1388 = vmatprep.subr.mxu0 0.0
          %1389 = vmatpush1.msra.mxu0 0.0
          %1390 = vmatprep.subr.mxu0 0.0
          %1391 = vmatpush1.msra.mxu0 0.0
          %1392 = vmatprep.subr.mxu0 0.0
          %1393 = vmatpush1.msra.mxu0 0.0
          %1394 = vmatprep.subr.mxu0 0.0
          %1395 = vmatpush1.msra.mxu0 0.0
          %1396 = vmatprep.subr.mxu0 0.0
          %1397 = vmatpush1.msra.mxu0 0.0
          %1398 = vmatprep.subr.mxu0 0.0
          %1399 = vmatpush1.msra.mxu0 0.0
          %1400 = vmatprep.subr.mxu0 0.0
          %1401 = vmatpush1.msra.mxu0 0.0
          %1402 = vmatprep.subr.mxu0 0.0
          %1403 = vmatpush1.msra.mxu0 0.0
          %1404 = vmatprep.subr.mxu0 0.0
          %1405 = vmatpush1.msra.mxu0 0.0
          %1406 = vmatprep.subr.mxu0 0.0
          %1407 = vmatpush1.msra.mxu0 0.0
          %1408 = vmatprep.subr.mxu0 0.0
          %1409 = vmatpush1.msra.mxu0 0.0
          %1410 = vmatprep.subr.mxu0 0.0
          %1411 = vmatpush1.msra.mxu0 0.0
          %1412 = vmatprep.subr.mxu0 0.0
          %1413 = vmatpush1.msra.mxu0 %v1384
          %1414 = vmatprep.subr.mxu0 0.0
          %1415 = vmatpush1.msra.mxu0 %v1383
          %1416 = vmatprep.subr.mxu0 0.0
          %1417 = vmatpush1.msra.mxu0 %v1382
          %1418 = vmatprep.subr.mxu0 0.0
          %1419 = vmatpush1.msra.mxu0 %v1381
          %1420 = vmatprep.subr.mxu0 0.0
          %1421 = vmatpush2.msra.mxu0 0.0
          %1422 = vmatprep.subr.mxu0 0.0
          %1423 = vmatpush2.msra.mxu0 0.0
          %1424 = vmatprep.subr.mxu0 0.0
          %1425 = vmatpush2.msra.mxu0 0.0
          %1426 = vmatprep.subr.mxu0 0.0
          %1427 = vmatpush2.msra.mxu0 0.0
          %1428 = vmatprep.subr.mxu0 0.0
          %1429 = vmatpush2.msra.mxu0 0.0
          %1430 = vmatprep.subr.mxu0 0.0
          %1431 = vmatpush2.msra.mxu0 0.0
          %1432 = vmatprep.subr.mxu0 0.0
          %1433 = vmatpush2.msra.mxu0 0.0
          %1434 = vmatprep.subr.mxu0 0.0
          %1435 = vmatpush2.msra.mxu0 0.0
          %1436 = vmatprep.subr.mxu0 0.0
          %1437 = vmatpush2.msra.mxu0 0.0
          %1438 = vmatprep.subr.mxu0 0.0
          %1439 = vmatpush2.msra.mxu0 0.0
          %1440 = vmatprep.subr.mxu0 0.0
          %1441 = vmatpush2.msra.mxu0 0.0
          %1442 = vmatprep.subr.mxu0 0.0
          %1443 = vmatpush2.msra.mxu0 0.0
          %1444 = vmatprep.subr.mxu0 0.0
          %1445 = vmatpush2.msra.mxu0 0.0
          %1446 = vmatprep.subr.mxu0 0.0
          %1447 = vmatpush2.msra.mxu0 0.0
          %1448 = vmatprep.subr.mxu0 0.0
          %1449 = vmatpush2.msra.mxu0 0.0
          %1450 = vmatprep.subr.mxu0 0.0
          %1451 = vmatpush2.msra.mxu0 0.0
          %1452 = vmatprep.mubr.f32.mxu0 0.0
          %1453 = vmatmul.mubr.f32.gmra.mxu0 %v1386
          %v1454 = vpop.f32.mrf.mxu0
          %v1455 = vadd.f32 0.0, %v1454
          %v1456 = vpop.f32.mrf.mxu0
          %1457 = vdwg.mxu0
          %s1458 = scalar_lea.vmem %s15, %s881
          %v1459 = vld [vmem:[%s1458] sm:$0xff]
          %v1460 = vld [vmem:[%s1458 + $0x8] sm:$0xff]
          %v1461 = vld [vmem:[%s1458 + $0x10] sm:$0xff]
          %v1462 = vld [vmem:[%s1458 + $0x18] sm:$0xff]
          %s1463 = scalar_lea.vmem %s16, %s875
          %v1464 = vld [vmem:[%s1463] sm:$0x1]
          %v1466 = vlaneseq
          %v1467 = vshrl.u32 %v1466, 7
          %v1468 = vsub.s32 0, %v1467
          %v1469 = vrot.slane %v1464, %v1468
          %v1472 = vsel %vm895, %v1455, 0
          %1474 = vmatprep.subr.mxu0 0.0
          %1475 = vmatpush1.msra.mxu0 0.0
          %1476 = vmatprep.subr.mxu0 0.0
          %1477 = vmatpush1.msra.mxu0 0.0
          %1478 = vmatprep.subr.mxu0 0.0
          %1479 = vmatpush1.msra.mxu0 0.0
          %1480 = vmatprep.subr.mxu0 0.0
          %1481 = vmatpush1.msra.mxu0 0.0
          %1482 = vmatprep.subr.mxu0 0.0
          %1483 = vmatpush1.msra.mxu0 0.0
          %1484 = vmatprep.subr.mxu0 0.0
          %1485 = vmatpush1.msra.mxu0 0.0
          %1486 = vmatprep.subr.mxu0 0.0
          %1487 = vmatpush1.msra.mxu0 0.0
          %1488 = vmatprep.subr.mxu0 0.0
          %1489 = vmatpush1.msra.mxu0 0.0
          %1490 = vmatprep.subr.mxu0 0.0
          %1491 = vmatpush1.msra.mxu0 0.0
          %1492 = vmatprep.subr.mxu0 0.0
          %1493 = vmatpush1.msra.mxu0 0.0
          %1494 = vmatprep.subr.mxu0 0.0
          %1495 = vmatpush1.msra.mxu0 0.0
          %1496 = vmatprep.subr.mxu0 0.0
          %1497 = vmatpush1.msra.mxu0 0.0
          %1498 = vmatprep.subr.mxu0 0.0
          %1499 = vmatpush1.msra.mxu0 %v1462
          %1500 = vmatprep.subr.mxu0 0.0
          %1501 = vmatpush1.msra.mxu0 %v1461
          %1502 = vmatprep.subr.mxu0 0.0
          %1503 = vmatpush1.msra.mxu0 %v1460
          %1504 = vmatprep.subr.mxu0 0.0
          %1505 = vmatpush1.msra.mxu0 %v1459
          %1506 = vmatprep.subr.mxu0 0.0
          %1507 = vmatpush2.msra.mxu0 0.0
          %1508 = vmatprep.subr.mxu0 0.0
          %1509 = vmatpush2.msra.mxu0 0.0
          %1510 = vmatprep.subr.mxu0 0.0
          %1511 = vmatpush2.msra.mxu0 0.0
          %1512 = vmatprep.subr.mxu0 0.0
          %1513 = vmatpush2.msra.mxu0 0.0
          %1514 = vmatprep.subr.mxu0 0.0
          %1515 = vmatpush2.msra.mxu0 0.0
          %1516 = vmatprep.subr.mxu0 0.0
          %1517 = vmatpush2.msra.mxu0 0.0
          %1518 = vmatprep.subr.mxu0 0.0
          %1519 = vmatpush2.msra.mxu0 0.0
          %1520 = vmatprep.subr.mxu0 0.0
          %1521 = vmatpush2.msra.mxu0 0.0
          %1522 = vmatprep.subr.mxu0 0.0
          %1523 = vmatpush2.msra.mxu0 0.0
          %1524 = vmatprep.subr.mxu0 0.0
          %1525 = vmatpush2.msra.mxu0 0.0
          %1526 = vmatprep.subr.mxu0 0.0
          %1527 = vmatpush2.msra.mxu0 0.0
          %1528 = vmatprep.subr.mxu0 0.0
          %1529 = vmatpush2.msra.mxu0 0.0
          %1530 = vmatprep.subr.mxu0 0.0
          %1531 = vmatpush2.msra.mxu0 0.0
          %1532 = vmatprep.subr.mxu0 0.0
          %1533 = vmatpush2.msra.mxu0 0.0
          %1534 = vmatprep.subr.mxu0 0.0
          %1535 = vmatpush2.msra.mxu0 0.0
          %1536 = vmatprep.subr.mxu0 0.0
          %1537 = vmatpush2.msra.mxu0 0.0
          %1538 = vmatprep.mubr.f32.mxu0 0.0
          %1539 = vmatmul.mubr.f32.gmra.mxu0 %v1472
          %v1540 = vpop.f32.mrf.mxu0
          %v1541 = vadd.f32 %v1469, %v1540
          %v1542 = vpop.f32.mrf.mxu0
          %1543 = vdwg.mxu0
          %v1544 = vadd.f32 %v1541, %v880
          %v1545 = vsel %vm895, %v1544, 0.0
          %1546 = vadd.xlane.f32.xlu0 %v1545
          %v1547 = vpop.xlane.xlu0 %1546
          %v1548 = vrcp.pop 32.0
          %v1549 = vmul.f32 %v1547, %v1548
          %v1550 = vsub.f32 %v1544, %v1549
          %v1551 = vmul.f32 %v1550, %v1550
          %v1552 = vsel %vm895, %v1551, 0.0
          %1553 = vadd.xlane.f32.xlu0 %v1552
          %v1554 = vpop.xlane.xlu0 %1553
          %v1555 = vmul.f32 %v1554, %v1548
          %v1556 = vadd.f32 %v1555, 1e-05
          %v1557 = vrsqrt.pop %v1556
          %v1558 = vmul.f32 %v1550, %v1557
          %s1559 = scalar_lea.vmem %s17, %s875
          %v1560 = vld [vmem:[%s1559] sm:$0x1]
          %v1562 = vlaneseq
          %v1563 = vshrl.u32 %v1562, 7
          %v1564 = vsub.s32 0, %v1563
          %v1565 = vrot.slane %v1560, %v1564
          %v1567 = vmul.f32 %v1558, %v1565
          %s1568 = scalar_lea.vmem %s18, %s875
          %v1569 = vld [vmem:[%s1568] sm:$0x1]
          %v1571 = vlaneseq
          %v1572 = vshrl.u32 %v1571, 7
          %v1573 = vsub.s32 0, %v1572
          %v1574 = vrot.slane %v1569, %v1573
          %v1576 = vadd.f32 %v1567, %v1574
          %v1577 = vmax.f32 %v1576, 0.0
        $region109: #{denosier_forward.1} parent=103 // loop_footer
          %s879 = sadd.s32 1, %s875
        $region110: #{denosier_forward.1} parent=103 // loop_footer_branch
          %874 = sbr.rel target = $region106
        $region111: #{denosier_forward.1} parent=103 // loop_exit
          _
        %v1578 = vld [vmem:[%s19] sm:$0xff]
        %v1579 = vld [vmem:[%s19 + $0x8] sm:$0xff]
        %v1580 = vld [vmem:[%s19 + $0x10] sm:$0xff]
        %v1581 = vld [vmem:[%s19 + $0x18] sm:$0xff]
        %v1582 = vld [vmem:[%s20] sm:$0x1]
        %v1584 = vlaneseq
        %v1585 = vshrl.u32 %v1584, 7
        %v1586 = vsub.s32 0, %v1585
        %v1587 = vrot.slane %v1582, %v1586
        %vm1589 = vcmask 261120
        %v1591 = vsel %vm1589, %v880, 0
        %1593 = vmatprep.subr.mxu0 0.0
        %1594 = vmatpush1.msra.mxu0 0.0
        %1595 = vmatprep.subr.mxu0 0.0
        %1596 = vmatpush1.msra.mxu0 0.0
        %1597 = vmatprep.subr.mxu0 0.0
        %1598 = vmatpush1.msra.mxu0 0.0
        %1599 = vmatprep.subr.mxu0 0.0
        %1600 = vmatpush1.msra.mxu0 0.0
        %1601 = vmatprep.subr.mxu0 0.0
        %1602 = vmatpush1.msra.mxu0 0.0
        %1603 = vmatprep.subr.mxu0 0.0
        %1604 = vmatpush1.msra.mxu0 0.0
        %1605 = vmatprep.subr.mxu0 0.0
        %1606 = vmatpush1.msra.mxu0 0.0
        %1607 = vmatprep.subr.mxu0 0.0
        %1608 = vmatpush1.msra.mxu0 0.0
        %1609 = vmatprep.subr.mxu0 0.0
        %1610 = vmatpush1.msra.mxu0 0.0
        %1611 = vmatprep.subr.mxu0 0.0
        %1612 = vmatpush1.msra.mxu0 0.0
        %1613 = vmatprep.subr.mxu0 0.0
        %1614 = vmatpush1.msra.mxu0 0.0
        %1615 = vmatprep.subr.mxu0 0.0
        %1616 = vmatpush1.msra.mxu0 0.0
        %1617 = vmatprep.subr.mxu0 0.0
        %1618 = vmatpush1.msra.mxu0 %v1581
        %1619 = vmatprep.subr.mxu0 0.0
        %1620 = vmatpush1.msra.mxu0 %v1580
        %1621 = vmatprep.subr.mxu0 0.0
        %1622 = vmatpush1.msra.mxu0 %v1579
        %1623 = vmatprep.subr.mxu0 0.0
        %1624 = vmatpush1.msra.mxu0 %v1578
        %1625 = vmatprep.subr.mxu0 0.0
        %1626 = vmatpush2.msra.mxu0 0.0
        %1627 = vmatprep.subr.mxu0 0.0
        %1628 = vmatpush2.msra.mxu0 0.0
        %1629 = vmatprep.subr.mxu0 0.0
        %1630 = vmatpush2.msra.mxu0 0.0
        %1631 = vmatprep.subr.mxu0 0.0
        %1632 = vmatpush2.msra.mxu0 0.0
        %1633 = vmatprep.subr.mxu0 0.0
        %1634 = vmatpush2.msra.mxu0 0.0
        %1635 = vmatprep.subr.mxu0 0.0
        %1636 = vmatpush2.msra.mxu0 0.0
        %1637 = vmatprep.subr.mxu0 0.0
        %1638 = vmatpush2.msra.mxu0 0.0
        %1639 = vmatprep.subr.mxu0 0.0
        %1640 = vmatpush2.msra.mxu0 0.0
        %1641 = vmatprep.subr.mxu0 0.0
        %1642 = vmatpush2.msra.mxu0 0.0
        %1643 = vmatprep.subr.mxu0 0.0
        %1644 = vmatpush2.msra.mxu0 0.0
        %1645 = vmatprep.subr.mxu0 0.0
        %1646 = vmatpush2.msra.mxu0 0.0
        %1647 = vmatprep.subr.mxu0 0.0
        %1648 = vmatpush2.msra.mxu0 0.0
        %1649 = vmatprep.subr.mxu0 0.0
        %1650 = vmatpush2.msra.mxu0 0.0
        %1651 = vmatprep.subr.mxu0 0.0
        %1652 = vmatpush2.msra.mxu0 0.0
        %1653 = vmatprep.subr.mxu0 0.0
        %1654 = vmatpush2.msra.mxu0 0.0
        %1655 = vmatprep.subr.mxu0 0.0
        %1656 = vmatpush2.msra.mxu0 0.0
        %1657 = vmatprep.mubr.f32.mxu0 0.0
        %1658 = vmatmul.mubr.f32.gmra.mxu0 %v1591
        %v1659 = vpop.f32.mrf.mxu0
        %v1660 = vadd.f32 %v1587, %v1659
        %v1661 = vpop.f32.mrf.mxu0
        %1662 = vdwg.mxu0
        %1663 = vst.msk [vmem:[%s673] sm:$0xff] %vm718, %v1660
        %s1664 = sand.u32 %s499, 1
        %s1665 = scalar_lea.sflag [#allocation3], %s1664
        %s1666 = sand.u32 %s499, 1
        %s1667 = smul.addr %s1666, 8
        %s1668 = scalar_lea.vmem [#allocation2], %s1667
        // Predicated region
        $region112: #{denosier_forward.1} parent=103 // pred_check
          %p1669 = pneg %p509
        $region113: #{denosier_forward.1} parent=103 // pred_check_branch
          %1671 = sbr.rel (%p1669) target = $region115
        $region114: #{denosier_forward.1} parent=103 // pred_region
          %s1673 = ssub.s32 128, 128
          %1674 = vsyncadd %s1665, %s1673
          %s1675 = smul.addr %s35, 128
          %s1676 = scalar_lea.hbm %s21, %s1675
          %s1678 = sshll.u32 %s1668, 4
          %s1679 = int_to_ptr.vmem [resolvable:$true] %s1678
          %1681 = dma.vmem_to_hbm [thread:$0]  %s1679, 128, %s1676, %s1665
        $region115: #{denosier_forward.1} parent=103 // pred_fallthru
          _
      $region104: #{denosier_forward.1} parent=5 // pred_fallthru
        _
      %p1682 = scmp.le.s32.totalorder 2, %s30
      // Predicated region
      $region116: #{denosier_forward.1} parent=5 // pred_check
        %p1683 = pneg %p1682
      $region117: #{denosier_forward.1} parent=5 // pred_check_branch
        %1685 = sbr.rel (%p1683) target = $region119
      $region118: #{denosier_forward.1} parent=5 // pred_region
        %s1686 = ssub.s32 %s30, 2
        // Predicated region
        $region120: #{denosier_forward.1} parent=118 // pred_check
          %p1687 = pneg %p515
        $region121: #{denosier_forward.1} parent=118 // pred_check_branch
          %1689 = sbr.rel (%p1687) target = $region123
        $region122: #{denosier_forward.1} parent=118 // pred_region
          %s1690 = sand.u32 %s500, 1
          %s1691 = scalar_lea.sflag [#allocation3], %s1690
          %s1692 = sand.u32 %s500, 1
          %s1693 = smul.addr %s1692, 8
          %s1694 = scalar_lea.vmem [#allocation2], %s1693
          %1695 = dma.done %s1691, 128
        $region123: #{denosier_forward.1} parent=118 // pred_fallthru
          _
      $region119: #{denosier_forward.1} parent=5 // pred_fallthru
        _
    $region6: #{denosier_forward.1} parent=1 // loop_footer
      %s34 = sadd.s32 1, %s30
    $region7: #{denosier_forward.1} parent=1 // loop_footer_branch
      %29 = sbr.rel target = $region3
    $region8: #{denosier_forward.1} parent=1 // loop_exit
      _
    %1696 = vsyncpa [#allocation3], 1
    %s1697 = scalar_lea.sflag [#allocation3], 1
    %1698 = vsyncpa %s1697, 1

</llo_original>
